<compile_context>
chip_gen: v6e
topology: v6e:2x2x1
jax: 0.10.0
libtpu: 0.0.40
codegen_flags: <defaults>
</compile_context>

<pallas_src>
import functools

import numpy as np
import jax
import jax.numpy as jnp
from jax.experimental import pallas as pl
from jax.experimental.pallas import tpu as pltpu

_EPS = 1e-12        # F.normalize default eps
_NEG = -1.0e30      # finite "minus infinity" (keeps exp/max NaN-free)


# ----------------------------------------------------------------------------
# Fused kernel: grid iterates over bank tiles (reduction axis, "arbitrary").
#   step 0      : normalize x_tar once (scaled by 1/beta2) into bf16 scratch,
#                 init online-softmax accumulators.
#   every step  : one (TN, D) bank tile -> (B, TN) global logits on the MXU,
#                 online max / sum-exp update, accumulate the label logit.
#   last step   : finalize global loss, compute source CE and local CE
#                 (tiny resident blocks), write the 3 scalars to a (1,128) slab.
# ----------------------------------------------------------------------------
def _fused_losses_kernel(
    # inputs
    x_src_ref,      # (B_src, C)  f32   source classifier logits
    lab_src_ref,    # (B_src, 1)  i32   source labels
    x_tar_ref,      # (B_tar, D)  f32   target features
    v_ref,          # (B_tar, D)  f32   padded per-unique-id centroids
    cnt_ref,        # (1, B_tar)  f32   samples per centroid slot (0 => padding)
    lab_loc_ref,    # (B_tar, 1)  i32   local (unique-rank) class id
    lab_tar_ref,    # (B_tar, 1)  i32   bank row index per target sample
    bank_ref,       # (TN, D)     bf16  current memory-bank tile
    # outputs
    out_ref,        # (1, 128)    f32   lanes 0/1/2 = loss_src / loss_local / loss_global
    # scratch
    xn_ref,         # (B_tar, D)  bf16  normalize(x_tar) / beta2
    m_ref,          # (B_tar, 1)  f32   running max   (global online softmax)
    l_ref,          # (B_tar, 1)  f32   running sum-exp
    glab_ref,       # (B_tar, 1)  f32   gathered label logit (global)
    *,
    beta1, beta2, tile_n, n_bank, n_bank_pad, b_src, b_tar,
):
    t = pl.program_id(0)
    last = pl.num_programs(0) - 1

    # ---- step 0: normalize target features once + init accumulators --------
    @pl.when(t == 0)
    def _init():
        x = x_tar_ref[...].astype(jnp.float32)
        inv = 1.0 / jnp.maximum(
            jnp.sqrt(jnp.sum(x * x, axis=-1, keepdims=True)), _EPS)
        # fold 1/beta2 into the normalized features (saves a (B, N) VPU pass)
        xn_ref[...] = (x * (inv * (1.0 / beta2))).astype(xn_ref.dtype)
        m_ref[...] = jnp.full(m_ref.shape, _NEG, dtype=jnp.float32)
        l_ref[...] = jnp.zeros(l_ref.shape, dtype=jnp.float32)
        glab_ref[...] = jnp.zeros(glab_ref.shape, dtype=jnp.float32)

    # ---- every step: one bank tile of the global logits ---------------------
    # bf16 x bf16 -> f32 accumulation; (TN, D) tile used as transposed RHS.
    logits_g = jax.lax.dot_general(
        xn_ref[...], bank_ref[...],
        dimension_numbers=(((1,), (1,)), ((), ())),
        preferred_element_type=jnp.float32)                       # (B_tar, TN)
    col = jax.lax.broadcasted_iota(jnp.int32, (b_tar, tile_n), 1) + t * tile_n
    if n_bank_pad != n_bank:           # static: only mask if the bank was padded
        logits_g = jnp.where(col < n_bank, logits_g, _NEG)

    m_prev = m_ref[...]
    m_new = jnp.maximum(m_prev, jnp.max(logits_g, axis=-1, keepdims=True))
    alpha = jnp.exp(m_prev - m_new)
    p = jnp.exp(logits_g - m_new)
    l_ref[...] = alpha * l_ref[...] + jnp.sum(p, axis=-1, keepdims=True)
    m_ref[...] = m_new
    # the label column falls in exactly one tile -> plain accumulation gathers it
    hit = col == lab_tar_ref[...]
    glab_ref[...] += jnp.sum(jnp.where(hit, logits_g, 0.0), axis=-1, keepdims=True)

    # ---- last step: finalize global, compute src CE + local CE, write out ---
    @pl.when(t == last)
    def _finalize():
        # global loss: mean_i ( lse_i - logits[i, idx_i] )
        lse_g = m_ref[...] + jnp.log(l_ref[...])
        loss_g = jnp.sum(lse_g - glab_ref[...]) * (1.0 / b_tar)

        # source CE straight from logits
        xs = x_src_ref[...].astype(jnp.float32)
        m_s = jnp.max(xs, axis=-1, keepdims=True)
        lse_s = m_s + jnp.log(jnp.sum(jnp.exp(xs - m_s), axis=-1, keepdims=True))
        col_s = jax.lax.broadcasted_iota(jnp.int32, xs.shape, 1)
        pick_s = jnp.sum(jnp.where(col_s == lab_src_ref[...], xs, 0.0),
                         axis=-1, keepdims=True)
        loss_s = jnp.sum(lse_s - pick_s) * (1.0 / b_src)

        # local loss: normalize(x) @ normalize(v).T / beta1, CE on unique-rank ids
        xt = x_tar_ref[...].astype(jnp.float32)
        inv_x = 1.0 / jnp.maximum(
            jnp.sqrt(jnp.sum(xt * xt, axis=-1, keepdims=True)), _EPS)
        xl = (xt * (inv_x * (1.0 / beta1))).astype(jnp.bfloat16)
        v = v_ref[...].astype(jnp.float32)
        inv_v = 1.0 / jnp.maximum(
            jnp.sqrt(jnp.sum(v * v, axis=-1, keepdims=True)), _EPS)
        vn = (v * inv_v).astype(jnp.bfloat16)
        logits_l = jax.lax.dot_general(
            xl, vn, dimension_numbers=(((1,), (1,)), ((), ())),
            preferred_element_type=jnp.float32)                   # (B_tar, B_tar)
        logits_l = jnp.where(cnt_ref[...] > 0.0, logits_l, _NEG)  # mask pad slots
        m_l = jnp.max(logits_l, axis=-1, keepdims=True)
        lse_l = m_l + jnp.log(jnp.sum(jnp.exp(logits_l - m_l), axis=-1, keepdims=True))
        col_l = jax.lax.broadcasted_iota(jnp.int32, logits_l.shape, 1)
        pick_l = jnp.sum(jnp.where(col_l == lab_loc_ref[...], logits_l, 0.0),
                         axis=-1, keepdims=True)
        loss_l = jnp.sum(lse_l - pick_l) * (1.0 / b_tar)

        # lane-dense scalar output slab
        lane = jax.lax.broadcasted_iota(jnp.int32, out_ref.shape, 1)
        out = jnp.where(lane == 0, loss_s, 0.0)
        out = jnp.where(lane == 1, loss_l, out)
        out = jnp.where(lane == 2, loss_g, out)
        out_ref[...] = out


def _fused_losses_call(x_src, label_src, x_tar, label_tar, v_padded, counts,
                       local_id, bank, beta1, beta2, bank_tile):
    b_src, n_cls = x_src.shape
    b_tar, d = x_tar.shape
    n_bank = bank.shape[0]

    # bank tile: lane-aligned (multiple of 128) unless the whole bank is one block.
    # Conservative default keeps the double-buffered bf16 tile well under every
    # generation's scoped-VMEM default (raise bank_tile + vmem_limit_bytes for v6e).
    tile_n = min(int(bank_tile), n_bank)
    if tile_n < n_bank:
        tile_n = max(128, (tile_n // 128) * 128)
    n_steps = -(-n_bank // tile_n)
    n_bank_pad = n_steps * tile_n

    bank_bf = bank.astype(jnp.bfloat16)     # bf16 operand: 2x MXU rate, half HBM bytes
    if n_bank_pad != n_bank:
        bank_bf = jnp.pad(bank_bf, ((0, n_bank_pad - n_bank), (0, 0)))

    kernel = functools.partial(
        _fused_losses_kernel,
        beta1=float(beta1), beta2=float(beta2), tile_n=tile_n,
        n_bank=n_bank, n_bank_pad=n_bank_pad, b_src=b_src, b_tar=b_tar)

    out = pl.pallas_call(
        kernel,
        out_shape=jax.ShapeDtypeStruct((1, 128), jnp.float32),
        grid_spec=pltpu.PrefetchScalarGridSpec(
            num_scalar_prefetch=0,
            grid=(n_steps,),
            in_specs=[
                pl.BlockSpec((b_src, n_cls), lambda t: (0, 0)),   # x_src (resident)
                pl.BlockSpec((b_src, 1), lambda t: (0, 0)),       # label_src
                pl.BlockSpec((b_tar, d), lambda t: (0, 0)),       # x_tar (resident)
                pl.BlockSpec((b_tar, d), lambda t: (0, 0)),       # centroids
                pl.BlockSpec((1, b_tar), lambda t: (0, 0)),       # slot counts
                pl.BlockSpec((b_tar, 1), lambda t: (0, 0)),       # local ids
                pl.BlockSpec((b_tar, 1), lambda t: (0, 0)),       # bank indices
                pl.BlockSpec((tile_n, d), lambda t: (t, 0)),      # bank tile (pipelined)
            ],
            out_specs=pl.BlockSpec((1, 128), lambda t: (0, 0)),
            scratch_shapes=[
                pltpu.VMEM((b_tar, d), jnp.bfloat16),   # normalize(x_tar)/beta2
                pltpu.VMEM((b_tar, 1), jnp.float32),    # running max
                pltpu.VMEM((b_tar, 1), jnp.float32),    # running sum-exp
                pltpu.VMEM((b_tar, 1), jnp.float32),    # gathered label logit
            ],
        ),
        compiler_params=pltpu.CompilerParams(
            dimension_semantics=("arbitrary",)),        # bank axis is a reduction
    )(x_src,
      label_src.astype(jnp.int32)[:, None],
      x_tar,
      v_padded,
      counts[None, :].astype(jnp.float32),
      local_id.astype(jnp.int32)[:, None],
      label_tar.astype(jnp.int32)[:, None],
      bank_bf)
    return out[0, 0], out[0, 1], out[0, 2]


# ----------------------------------------------------------------------------
# Losses.forward — fully jit-able (no host-side unique / no np.asarray sync)
# ----------------------------------------------------------------------------
@functools.partial(jax.jit, static_argnames=("beta1", "beta2", "bank_tile"))
def losses_forward(x_src, label_src, x_tar, label_tar, epoch, bank,
                   beta1=0.1, beta2=0.05, bank_tile=2048):
    b_tar = x_tar.shape[0]
    idx = label_tar.astype(jnp.int32)

    # device-side torch.unique / label_dic bookkeeping
    eq = idx[:, None] == idx[None, :]                                  # (B, B)
    is_rep = jnp.argmax(eq, axis=1) == jnp.arange(b_tar)               # first occurrence
    local_id = jnp.sum((idx[None, :] < idx[:, None]) & is_rep[None, :],
                       axis=1).astype(jnp.int32)                       # rank in sorted uniques
    # centroid means, placed in slot `local_id` (unused slots stay zero, count 0)
    sel = (local_id[None, :] == jnp.arange(b_tar)[:, None]).astype(jnp.float32)
    counts = jnp.sum(sel, axis=1)                                      # (B,)
    v_padded = jnp.matmul(sel, x_tar, precision=jax.lax.Precision.HIGHEST)
    v_padded = v_padded / jnp.maximum(counts, 1.0)[:, None]

    loss_s, loss_l, loss_g = _fused_losses_call(
        x_src, label_src, x_tar, idx, v_padded, counts, local_id, bank,
        beta1, beta2, bank_tile)

    loss = loss_s + loss_l + jnp.where(epoch >= 10, jnp.float32(0.2),
                                       jnp.float32(0.0)) * loss_g
    return loss, loss_s, loss_l, loss_g


# ----------------------------------------------------------------------------
# Pure numpy reference (mirrors the PyTorch forward; emulates the kernel's
# bf16 matmul-operand quantization so the comparison is tight).
# ----------------------------------------------------------------------------
def _np_log_softmax(z):
    m = z.max(axis=1, keepdims=True)
    return z - (m + np.log(np.exp(z - m).sum(axis=1, keepdims=True)))


def _bf16_round(a):
    return np.asarray(
        jnp.asarray(np.asarray(a, np.float32)).astype(jnp.bfloat16)
        .astype(jnp.float32), np.float64)


def _reference(x_src, label_src, x_tar, label_tar, epoch, bank, beta1, beta2):
    x_src = np.asarray(x_src, np.float64)
    x_tar = np.asarray(x_tar, np.float64)
    bank = np.asarray(bank, np.float64)
    label_src = np.asarray(label_src)
    idx = np.asarray(label_tar)

    ls = _np_log_softmax(x_src)
    loss_s = -ls[np.arange(x_src.shape[0]), label_src].mean()

    uni = np.unique(idx)
    v = np.stack([x_tar[idx == u].mean(axis=0) for u in uni])
    vn = v / np.maximum(np.linalg.norm(v, axis=1, keepdims=True), 1e-12)
    xn = x_tar / np.maximum(np.linalg.norm(x_tar, axis=1, keepdims=True), 1e-12)
    logits_l = _bf16_round(xn / beta1) @ _bf16_round(vn).T
    lab_l = np.searchsorted(uni, idx)
    loss_l = -_np_log_softmax(logits_l)[np.arange(len(idx)), lab_l].mean()

    logits_g = _bf16_round(xn / beta2) @ _bf16_round(bank).T
    loss_g = -_np_log_softmax(logits_g)[np.arange(len(idx)), idx].mean()

    loss = loss_s + loss_l + (0.2 * loss_g if epoch >= 10 else 0.0)
    return loss, loss_s, loss_l, loss_g


# ----------------------------------------------------------------------------
# Demo
# ----------------------------------------------------------------------------
if __name__ == "__main__":
    key = jax.random.PRNGKey(0)
    k_src, k_tar, k_bank = jax.random.split(key, 3)

    B_SRC, NUM_CLASSES = 8, 128     # source classifier logits
    B_TAR, D = 8, 512               # GlobalLoss bank feature dim is 512
    BANK_SIZE = 1024                # synthetic memory bank

    x_src = jax.random.normal(k_src, (B_SRC, NUM_CLASSES), dtype=jnp.float32)
    label_src = jnp.array([3, 17, 42, 5, 99, 0, 63, 127], dtype=jnp.int32)

    x_tar = jax.random.normal(k_tar, (B_TAR, D), dtype=jnp.float32)
    # target instance indices with duplicates (PK-sampler style)
    label_tar = jnp.array([3, 3, 7, 7, 10, 10, 10, 42], dtype=jnp.int32)

    # GlobalLoss.__init__: self.bank = torch.rand(bank_size, 512)
    bank = jax.random.uniform(k_bank, (BANK_SIZE, D), dtype=jnp.float32)

    epoch = 12  # >= 10 so loss_g contributes 0.2x

    # bank_tile=256 -> 4 grid steps, exercising the tiled online-softmax path.
    outs = losses_forward(x_src, label_src, x_tar, label_tar, epoch, bank,
                          beta1=0.1, beta2=0.05, bank_tile=256)
    outs = jax.block_until_ready(outs)
    loss, loss_s, loss_l, loss_g = (np.asarray(o) for o in outs)

    refs = _reference(x_src, label_src, x_tar, label_tar, epoch, bank, 0.1, 0.05)
    for name, got, ref in zip(("loss", "loss_s", "loss_l", "loss_g"),
                              (loss, loss_s, loss_l, loss_g), refs):
        assert np.isfinite(got), f"{name} is not finite"
        np.testing.assert_allclose(got, ref, rtol=2e-2, atol=2e-2,
                                   err_msg=f"{name} mismatch")

    print("KERNEL_OK")
</pallas_src>

<mosaic_0001>
module attributes {stable_mosaic.version = 11 : i64} {
  func.func @_fused_losses_kernel(%arg0: i32, %arg1: memref<8x128xf32, #tpu.memory_space<vmem>>, %arg2: memref<8x1xi32, #tpu.memory_space<vmem>>, %arg3: memref<8x512xf32, #tpu.memory_space<vmem>>, %arg4: memref<8x512xf32, #tpu.memory_space<vmem>>, %arg5: memref<1x8xf32, #tpu.memory_space<vmem>>, %arg6: memref<8x1xi32, #tpu.memory_space<vmem>>, %arg7: memref<8x1xi32, #tpu.memory_space<vmem>>, %arg8: memref<256x512xbf16, #tpu.memory_space<vmem>>, %arg9: memref<1x128xf32, #tpu.memory_space<vmem>>, %arg10: memref<8x512xbf16, #tpu.memory_space<vmem>>, %arg11: memref<8x1xf32, #tpu.memory_space<vmem>>, %arg12: memref<8x1xf32, #tpu.memory_space<vmem>>, %arg13: memref<8x1xf32, #tpu.memory_space<vmem>>) attributes {dimension_semantics = [#tpu.dimension_semantics<arbitrary>], iteration_bounds = array<i64: 4>, scalar_prefetch = 0 : i64, scratch_operands = 4 : i64, tpu.core_type = #tpu.core_type<tc>, window_params = [{pipeline_mode = #tpu.pipeline_mode<synchronous>, transform_indices = @transform_0, window_bounds = array<i64: 8, 128>}, {pipeline_mode = #tpu.pipeline_mode<synchronous>, transform_indices = @transform_1, window_bounds = array<i64: 8, 1>}, {pipeline_mode = #tpu.pipeline_mode<synchronous>, transform_indices = @transform_2, window_bounds = array<i64: 8, 512>}, {pipeline_mode = #tpu.pipeline_mode<synchronous>, transform_indices = @transform_3, window_bounds = array<i64: 8, 512>}, {pipeline_mode = #tpu.pipeline_mode<synchronous>, transform_indices = @transform_4, window_bounds = array<i64: 1, 8>}, {pipeline_mode = #tpu.pipeline_mode<synchronous>, transform_indices = @transform_5, window_bounds = array<i64: 8, 1>}, {pipeline_mode = #tpu.pipeline_mode<synchronous>, transform_indices = @transform_6, window_bounds = array<i64: 8, 1>}, {transform_indices = @transform_7, window_bounds = array<i64: 256, 512>}, {pipeline_mode = #tpu.pipeline_mode<synchronous>, transform_indices = @transform_8, window_bounds = array<i64: 1, 128>}]} {
    %c0_i32 = arith.constant 0 : i32
    %0 = arith.cmpi eq, %arg0, %c0_i32 : i32
    %1 = arith.extui %0 : i1 to i32
    %c0_i32_0 = arith.constant 0 : i32
    %2 = arith.cmpi ne, %1, %c0_i32_0 : i32
    scf.if %2 {
      %c0_23 = arith.constant 0 : index
      %c0_24 = arith.constant 0 : index
      %39 = vector.load %arg3[%c0_23, %c0_24] : memref<8x512xf32, #tpu.memory_space<vmem>>, vector<8x512xf32>
      %40 = arith.mulf %39, %39 : vector<8x512xf32>
      %cst_25 = arith.constant dense<0.000000e+00> : vector<8xf32>
      %41 = vector.multi_reduction <add>, %40, %cst_25 [1] : vector<8x512xf32> to vector<8xf32>
      %42 = vector.shape_cast %41 : vector<8xf32> to vector<8x1xf32>
      %43 = math.sqrt %42 : vector<8x1xf32>
      %cst_26 = arith.constant 9.99999996E-13 : f32
      %44 = vector.broadcast %cst_26 : f32 to vector<8x1xf32>
      %45 = arith.maximumf %43, %44 : vector<8x1xf32>
      %cst_27 = arith.constant 1.000000e+00 : f32
      %46 = vector.broadcast %cst_27 : f32 to vector<8x1xf32>
      %47 = arith.divf %46, %45 : vector<8x1xf32>
      %cst_28 = arith.constant 2.000000e+01 : f32
      %48 = vector.broadcast %cst_28 : f32 to vector<8x1xf32>
      %49 = arith.mulf %47, %48 : vector<8x1xf32>
      %50 = vector.broadcast %49 : vector<8x1xf32> to vector<8x512xf32>
      %51 = arith.mulf %39, %50 : vector<8x512xf32>
      %52 = arith.truncf %51 : vector<8x512xf32> to vector<8x512xbf16>
      %c0_29 = arith.constant 0 : index
      %c0_30 = arith.constant 0 : index
      %53 = vector.load %arg10[%c0_29, %c0_30] : memref<8x512xbf16, #tpu.memory_space<vmem>>, vector<8x512xbf16>
      tpu.vector_store %arg10[%c0_29, %c0_30], %52 {strides = array<i32>} : memref<8x512xbf16, #tpu.memory_space<vmem>>, vector<8x512xbf16>,
      %cst_31 = arith.constant -1.000000e+30 : f32
      %54 = vector.broadcast %cst_31 : f32 to vector<8x1xf32>
      %c0_32 = arith.constant 0 : index
      %c0_33 = arith.constant 0 : index
      %55 = vector.load %arg11[%c0_32, %c0_33] : memref<8x1xf32, #tpu.memory_space<vmem>>, vector<8x1xf32>
      tpu.vector_store %arg11[%c0_32, %c0_33], %54 {strides = array<i32>} : memref<8x1xf32, #tpu.memory_space<vmem>>, vector<8x1xf32>,
      %cst_34 = arith.constant 0.000000e+00 : f32
      %56 = vector.broadcast %cst_34 : f32 to vector<8x1xf32>
      %c0_35 = arith.constant 0 : index
      %c0_36 = arith.constant 0 : index
      %57 = vector.load %arg12[%c0_35, %c0_36] : memref<8x1xf32, #tpu.memory_space<vmem>>, vector<8x1xf32>
      tpu.vector_store %arg12[%c0_35, %c0_36], %56 {strides = array<i32>} : memref<8x1xf32, #tpu.memory_space<vmem>>, vector<8x1xf32>,
      %cst_37 = arith.constant 0.000000e+00 : f32
      %58 = vector.broadcast %cst_37 : f32 to vector<8x1xf32>
      %c0_38 = arith.constant 0 : index
      %c0_39 = arith.constant 0 : index
      %59 = vector.load %arg13[%c0_38, %c0_39] : memref<8x1xf32, #tpu.memory_space<vmem>>, vector<8x1xf32>
      tpu.vector_store %arg13[%c0_38, %c0_39], %58 {strides = array<i32>} : memref<8x1xf32, #tpu.memory_space<vmem>>, vector<8x1xf32>,
    } else {
    }
    %c0 = arith.constant 0 : index
    %c0_1 = arith.constant 0 : index
    %3 = vector.load %arg10[%c0, %c0_1] : memref<8x512xbf16, #tpu.memory_space<vmem>>, vector<8x512xbf16>
    %c0_2 = arith.constant 0 : index
    %c0_3 = arith.constant 0 : index
    %4 = vector.load %arg8[%c0_2, %c0_3] : memref<256x512xbf16, #tpu.memory_space<vmem>>, vector<256x512xbf16>
    %cst = arith.constant dense<0.000000e+00> : vector<8x256xf32>
    %5 = tpu.matmul %3, %4, %cst {dimension_numbers = #tpu.dot_dimension_numbers<[1], [1], [0], [0], [0, 0, 1, 0], [], []>} : vector<8x512xbf16>, vector<256x512xbf16>, vector<8x256xf32> -> vector<8x256xf32>
    %6 = tpu.iota {dimensions = array<i32: 1>} : vector<8x256xi32>
    %c256_i32 = arith.constant 256 : i32
    %7 = arith.muli %arg0, %c256_i32 : i32
    %8 = vector.broadcast %7 : i32 to vector<8x256xi32>
    %9 = arith.addi %6, %8 : vector<8x256xi32>
    %c0_4 = arith.constant 0 : index
    %c0_5 = arith.constant 0 : index
    %10 = vector.load %arg11[%c0_4, %c0_5] : memref<8x1xf32, #tpu.memory_space<vmem>>, vector<8x1xf32>
    %cst_6 = arith.constant dense<0xFF800000> : vector<8xf32>
    %11 = vector.multi_reduction <maximumf>, %5, %cst_6 [1] : vector<8x256xf32> to vector<8xf32>
    %12 = vector.shape_cast %11 : vector<8xf32> to vector<8x1xf32>
    %13 = arith.maximumf %10, %12 : vector<8x1xf32>
    %14 = arith.subf %10, %13 : vector<8x1xf32>
    %15 = math.exp %14 : vector<8x1xf32>
    %16 = vector.broadcast %13 : vector<8x1xf32> to vector<8x256xf32>
    %17 = arith.subf %5, %16 : vector<8x256xf32>
    %18 = math.exp %17 : vector<8x256xf32>
    %c0_7 = arith.constant 0 : index
    %c0_8 = arith.constant 0 : index
    %19 = vector.load %arg12[%c0_7, %c0_8] : memref<8x1xf32, #tpu.memory_space<vmem>>, vector<8x1xf32>
    %20 = arith.mulf %15, %19 : vector<8x1xf32>
    %cst_9 = arith.constant dense<0.000000e+00> : vector<8xf32>
    %21 = vector.multi_reduction <add>, %18, %cst_9 [1] : vector<8x256xf32> to vector<8xf32>
    %22 = vector.shape_cast %21 : vector<8xf32> to vector<8x1xf32>
    %23 = arith.addf %20, %22 : vector<8x1xf32>
    %c0_10 = arith.constant 0 : index
    %c0_11 = arith.constant 0 : index
    %24 = vector.load %arg12[%c0_10, %c0_11] : memref<8x1xf32, #tpu.memory_space<vmem>>, vector<8x1xf32>
    tpu.vector_store %arg12[%c0_10, %c0_11], %23 {strides = array<i32>} : memref<8x1xf32, #tpu.memory_space<vmem>>, vector<8x1xf32>,
    %c0_12 = arith.constant 0 : index
    %c0_13 = arith.constant 0 : index
    %25 = vector.load %arg11[%c0_12, %c0_13] : memref<8x1xf32, #tpu.memory_space<vmem>>, vector<8x1xf32>
    tpu.vector_store %arg11[%c0_12, %c0_13], %13 {strides = array<i32>} : memref<8x1xf32, #tpu.memory_space<vmem>>, vector<8x1xf32>,
    %c0_14 = arith.constant 0 : index
    %c0_15 = arith.constant 0 : index
    %26 = vector.load %arg7[%c0_14, %c0_15] : memref<8x1xi32, #tpu.memory_space<vmem>>, vector<8x1xi32>
    %27 = vector.broadcast %26 : vector<8x1xi32> to vector<8x256xi32>
    %28 = arith.cmpi eq, %9, %27 : vector<8x256xi32>
    %c0_16 = arith.constant 0 : index
    %c0_17 = arith.constant 0 : index
    %29 = vector.load %arg13[%c0_16, %c0_17] : memref<8x1xf32, #tpu.memory_space<vmem>>, vector<8x1xf32>
    %cst_18 = arith.constant 0.000000e+00 : f32
    %30 = vector.broadcast %cst_18 : f32 to vector<8x256xf32>
    %31 = arith.select %28, %5, %30 : vector<8x256xi1>, vector<8x256xf32>
    %cst_19 = arith.constant dense<0.000000e+00> : vector<8xf32>
    %32 = vector.multi_reduction <add>, %31, %cst_19 [1] : vector<8x256xf32> to vector<8xf32>
    %33 = vector.shape_cast %32 : vector<8xf32> to vector<8x1xf32>
    %34 = arith.addf %29, %33 : vector<8x1xf32>
    %c0_20 = arith.constant 0 : index
    %c0_21 = arith.constant 0 : index
    %35 = vector.load %arg13[%c0_20, %c0_21] : memref<8x1xf32, #tpu.memory_space<vmem>>, vector<8x1xf32>
    tpu.vector_store %arg13[%c0_20, %c0_21], %34 {strides = array<i32>} : memref<8x1xf32, #tpu.memory_space<vmem>>, vector<8x1xf32>,
    %c3_i32 = arith.constant 3 : i32
    %36 = arith.cmpi eq, %arg0, %c3_i32 : i32
    %37 = arith.extui %36 : i1 to i32
    %c0_i32_22 = arith.constant 0 : i32
    %38 = arith.cmpi ne, %37, %c0_i32_22 : i32
    scf.if %38 {
      %c0_23 = arith.constant 0 : index
      %c0_24 = arith.constant 0 : index
      %39 = vector.load %arg11[%c0_23, %c0_24] : memref<8x1xf32, #tpu.memory_space<vmem>>, vector<8x1xf32>
      %c0_25 = arith.constant 0 : index
      %c0_26 = arith.constant 0 : index
      %40 = vector.load %arg12[%c0_25, %c0_26] : memref<8x1xf32, #tpu.memory_space<vmem>>, vector<8x1xf32>
      %41 = math.log %40 : vector<8x1xf32>
      %42 = arith.addf %39, %41 : vector<8x1xf32>
      %c0_27 = arith.constant 0 : index
      %c0_28 = arith.constant 0 : index
      %43 = vector.load %arg13[%c0_27, %c0_28] : memref<8x1xf32, #tpu.memory_space<vmem>>, vector<8x1xf32>
      %44 = arith.subf %42, %43 : vector<8x1xf32>
      %45 = vector.shape_cast %44 : vector<8x1xf32> to vector<1x8x1xf32>
      %cst_29 = arith.constant dense<0.000000e+00> : vector<1xf32>
      %46 = vector.multi_reduction <add>, %45, %cst_29 [1, 2] : vector<1x8x1xf32> to vector<1xf32>
      %47 = vector.shape_cast %46 : vector<1xf32> to vector<1x1x1xf32>
      %48 = vector.extract %47[0, 0, 0] : f32 from vector<1x1x1xf32>
      %cst_30 = arith.constant 1.250000e-01 : f32
      %49 = arith.mulf %48, %cst_30 : f32
      %c0_31 = arith.constant 0 : index
      %c0_32 = arith.constant 0 : index
      %50 = vector.load %arg1[%c0_31, %c0_32] : memref<8x128xf32, #tpu.memory_space<vmem>>, vector<8x128xf32>
      %cst_33 = arith.constant dense<0xFF800000> : vector<8xf32>
      %51 = vector.multi_reduction <maximumf>, %50, %cst_33 [1] : vector<8x128xf32> to vector<8xf32>
      %52 = vector.shape_cast %51 : vector<8xf32> to vector<8x1xf32>
      %53 = vector.broadcast %52 : vector<8x1xf32> to vector<8x128xf32>
      %54 = arith.subf %50, %53 : vector<8x128xf32>
      %55 = math.exp %54 : vector<8x128xf32>
      %cst_34 = arith.constant dense<0.000000e+00> : vector<8xf32>
      %56 = vector.multi_reduction <add>, %55, %cst_34 [1] : vector<8x128xf32> to vector<8xf32>
      %57 = vector.shape_cast %56 : vector<8xf32> to vector<8x1xf32>
      %58 = math.log %57 : vector<8x1xf32>
      %59 = arith.addf %52, %58 : vector<8x1xf32>
      %60 = tpu.iota {dimensions = array<i32: 1>} : vector<8x128xi32>
      %c0_35 = arith.constant 0 : index
      %c0_36 = arith.constant 0 : index
      %61 = vector.load %arg2[%c0_35, %c0_36] : memref<8x1xi32, #tpu.memory_space<vmem>>, vector<8x1xi32>
      %62 = vector.broadcast %61 : vector<8x1xi32> to vector<8x128xi32>
      %63 = arith.cmpi eq, %60, %62 : vector<8x128xi32>
      %cst_37 = arith.constant 0.000000e+00 : f32
      %64 = vector.broadcast %cst_37 : f32 to vector<8x128xf32>
      %65 = arith.select %63, %50, %64 : vector<8x128xi1>, vector<8x128xf32>
      %cst_38 = arith.constant dense<0.000000e+00> : vector<8xf32>
      %66 = vector.multi_reduction <add>, %65, %cst_38 [1] : vector<8x128xf32> to vector<8xf32>
      %67 = vector.shape_cast %66 : vector<8xf32> to vector<8x1xf32>
      %68 = arith.subf %59, %67 : vector<8x1xf32>
      %69 = vector.shape_cast %68 : vector<8x1xf32> to vector<1x8x1xf32>
      %cst_39 = arith.constant dense<0.000000e+00> : vector<1xf32>
      %70 = vector.multi_reduction <add>, %69, %cst_39 [1, 2] : vector<1x8x1xf32> to vector<1xf32>
      %71 = vector.shape_cast %70 : vector<1xf32> to vector<1x1x1xf32>
      %72 = vector.extract %71[0, 0, 0] : f32 from vector<1x1x1xf32>
      %cst_40 = arith.constant 1.250000e-01 : f32
      %73 = arith.mulf %72, %cst_40 : f32
      %c0_41 = arith.constant 0 : index
      %c0_42 = arith.constant 0 : index
      %74 = vector.load %arg3[%c0_41, %c0_42] : memref<8x512xf32, #tpu.memory_space<vmem>>, vector<8x512xf32>
      %75 = arith.mulf %74, %74 : vector<8x512xf32>
      %cst_43 = arith.constant dense<0.000000e+00> : vector<8xf32>
      %76 = vector.multi_reduction <add>, %75, %cst_43 [1] : vector<8x512xf32> to vector<8xf32>
      %77 = vector.shape_cast %76 : vector<8xf32> to vector<8x1xf32>
      %78 = math.sqrt %77 : vector<8x1xf32>
      %cst_44 = arith.constant 9.99999996E-13 : f32
      %79 = vector.broadcast %cst_44 : f32 to vector<8x1xf32>
      %80 = arith.maximumf %78, %79 : vector<8x1xf32>
      %cst_45 = arith.constant 1.000000e+00 : f32
      %81 = vector.broadcast %cst_45 : f32 to vector<8x1xf32>
      %82 = arith.divf %81, %80 : vector<8x1xf32>
      %cst_46 = arith.constant 1.000000e+01 : f32
      %83 = vector.broadcast %cst_46 : f32 to vector<8x1xf32>
      %84 = arith.mulf %82, %83 : vector<8x1xf32>
      %85 = vector.broadcast %84 : vector<8x1xf32> to vector<8x512xf32>
      %86 = arith.mulf %74, %85 : vector<8x512xf32>
      %87 = arith.truncf %86 : vector<8x512xf32> to vector<8x512xbf16>
      %c0_47 = arith.constant 0 : index
      %c0_48 = arith.constant 0 : index
      %88 = vector.load %arg4[%c0_47, %c0_48] : memref<8x512xf32, #tpu.memory_space<vmem>>, vector<8x512xf32>
      %89 = arith.mulf %88, %88 : vector<8x512xf32>
      %cst_49 = arith.constant dense<0.000000e+00> : vector<8xf32>
      %90 = vector.multi_reduction <add>, %89, %cst_49 [1] : vector<8x512xf32> to vector<8xf32>
      %91 = vector.shape_cast %90 : vector<8xf32> to vector<8x1xf32>
      %92 = math.sqrt %91 : vector<8x1xf32>
      %cst_50 = arith.constant 9.99999996E-13 : f32
      %93 = vector.broadcast %cst_50 : f32 to vector<8x1xf32>
      %94 = arith.maximumf %92, %93 : vector<8x1xf32>
      %cst_51 = arith.constant 1.000000e+00 : f32
      %95 = vector.broadcast %cst_51 : f32 to vector<8x1xf32>
      %96 = arith.divf %95, %94 : vector<8x1xf32>
      %97 = vector.broadcast %96 : vector<8x1xf32> to vector<8x512xf32>
      %98 = arith.mulf %88, %97 : vector<8x512xf32>
      %99 = arith.truncf %98 : vector<8x512xf32> to vector<8x512xbf16>
      %cst_52 = arith.constant dense<0.000000e+00> : vector<8x8xf32>
      %100 = tpu.matmul %87, %99, %cst_52 {dimension_numbers = #tpu.dot_dimension_numbers<[1], [1], [0], [0], [0, 0, 1, 0], [], []>} : vector<8x512xbf16>, vector<8x512xbf16>, vector<8x8xf32> -> vector<8x8xf32>
      %c0_53 = arith.constant 0 : index
      %c0_54 = arith.constant 0 : index
      %101 = vector.load %arg5[%c0_53, %c0_54] : memref<1x8xf32, #tpu.memory_space<vmem>>, vector<1x8xf32>
      %cst_55 = arith.constant 0.000000e+00 : f32
      %102 = vector.broadcast %cst_55 : f32 to vector<1x8xf32>
      %103 = arith.cmpf ogt, %101, %102 : vector<1x8xf32>
      %cst_56 = arith.constant -1.000000e+30 : f32
      %104 = vector.shape_cast %103 : vector<1x8xi1> to vector<1x8xi1>
      %105 = vector.broadcast %104 : vector<1x8xi1> to vector<8x8xi1>
      %106 = vector.broadcast %cst_56 : f32 to vector<8x8xf32>
      %107 = arith.select %105, %100, %106 : vector<8x8xi1>, vector<8x8xf32>
      %cst_57 = arith.constant dense<0xFF800000> : vector<8xf32>
      %108 = vector.multi_reduction <maximumf>, %107, %cst_57 [1] : vector<8x8xf32> to vector<8xf32>
      %109 = vector.shape_cast %108 : vector<8xf32> to vector<8x1xf32>
      %110 = vector.broadcast %109 : vector<8x1xf32> to vector<8x8xf32>
      %111 = arith.subf %107, %110 : vector<8x8xf32>
      %112 = math.exp %111 : vector<8x8xf32>
      %cst_58 = arith.constant dense<0.000000e+00> : vector<8xf32>
      %113 = vector.multi_reduction <add>, %112, %cst_58 [1] : vector<8x8xf32> to vector<8xf32>
      %114 = vector.shape_cast %113 : vector<8xf32> to vector<8x1xf32>
      %115 = math.log %114 : vector<8x1xf32>
      %116 = arith.addf %109, %115 : vector<8x1xf32>
      %117 = tpu.iota {dimensions = array<i32: 1>} : vector<8x8xi32>
      %c0_59 = arith.constant 0 : index
      %c0_60 = arith.constant 0 : index
      %118 = vector.load %arg6[%c0_59, %c0_60] : memref<8x1xi32, #tpu.memory_space<vmem>>, vector<8x1xi32>
      %119 = vector.broadcast %118 : vector<8x1xi32> to vector<8x8xi32>
      %120 = arith.cmpi eq, %117, %119 : vector<8x8xi32>
      %cst_61 = arith.constant 0.000000e+00 : f32
      %121 = vector.broadcast %cst_61 : f32 to vector<8x8xf32>
      %122 = arith.select %120, %107, %121 : vector<8x8xi1>, vector<8x8xf32>
      %cst_62 = arith.constant dense<0.000000e+00> : vector<8xf32>
      %123 = vector.multi_reduction <add>, %122, %cst_62 [1] : vector<8x8xf32> to vector<8xf32>
      %124 = vector.shape_cast %123 : vector<8xf32> to vector<8x1xf32>
      %125 = arith.subf %116, %124 : vector<8x1xf32>
      %126 = vector.shape_cast %125 : vector<8x1xf32> to vector<1x8x1xf32>
      %cst_63 = arith.constant dense<0.000000e+00> : vector<1xf32>
      %127 = vector.multi_reduction <add>, %126, %cst_63 [1, 2] : vector<1x8x1xf32> to vector<1xf32>
      %128 = vector.shape_cast %127 : vector<1xf32> to vector<1x1x1xf32>
      %129 = vector.extract %128[0, 0, 0] : f32 from vector<1x1x1xf32>
      %cst_64 = arith.constant 1.250000e-01 : f32
      %130 = arith.mulf %129, %cst_64 : f32
      %131 = tpu.iota {dimensions = array<i32: 1>} : vector<1x128xi32>
      %c0_i32_65 = arith.constant 0 : i32
      %132 = vector.broadcast %c0_i32_65 : i32 to vector<1x128xi32>
      %133 = arith.cmpi eq, %131, %132 : vector<1x128xi32>
      %cst_66 = arith.constant 0.000000e+00 : f32
      %134 = vector.broadcast %73 : f32 to vector<1x128xf32>
      %135 = vector.broadcast %cst_66 : f32 to vector<1x128xf32>
      %136 = arith.select %133, %134, %135 : vector<1x128xi1>, vector<1x128xf32>
      %c1_i32 = arith.constant 1 : i32
      %137 = vector.broadcast %c1_i32 : i32 to vector<1x128xi32>
      %138 = arith.cmpi eq, %131, %137 : vector<1x128xi32>
      %139 = vector.broadcast %130 : f32 to vector<1x128xf32>
      %140 = arith.select %138, %139, %136 : vector<1x128xi1>, vector<1x128xf32>
      %c2_i32 = arith.constant 2 : i32
      %141 = vector.broadcast %c2_i32 : i32 to vector<1x128xi32>
      %142 = arith.cmpi eq, %131, %141 : vector<1x128xi32>
      %143 = vector.broadcast %49 : f32 to vector<1x128xf32>
      %144 = arith.select %142, %143, %140 : vector<1x128xi1>, vector<1x128xf32>
      %c0_67 = arith.constant 0 : index
      %c0_68 = arith.constant 0 : index
      %145 = vector.load %arg9[%c0_67, %c0_68] : memref<1x128xf32, #tpu.memory_space<vmem>>, vector<1x128xf32>
      tpu.vector_store %arg9[%c0_67, %c0_68], %144 {strides = array<i32>} : memref<1x128xf32, #tpu.memory_space<vmem>>, vector<1x128xf32>,
    } else {
    }
    return
  }
  func.func @transform_0(%arg0: i32) -> (i32, i32) {
    %c0_i32 = arith.constant 0 : i32
    %c0_i32_0 = arith.constant 0 : i32
    %c0_i32_1 = arith.constant 0 : i32
    return %c0_i32, %c0_i32_0 : i32, i32
  }
  func.func @transform_1(%arg0: i32) -> (i32, i32) {
    %c0_i32 = arith.constant 0 : i32
    %c0_i32_0 = arith.constant 0 : i32
    %c0_i32_1 = arith.constant 0 : i32
    return %c0_i32, %c0_i32_0 : i32, i32
  }
  func.func @transform_2(%arg0: i32) -> (i32, i32) {
    %c0_i32 = arith.constant 0 : i32
    %c0_i32_0 = arith.constant 0 : i32
    %c0_i32_1 = arith.constant 0 : i32
    return %c0_i32, %c0_i32_0 : i32, i32
  }
  func.func @transform_3(%arg0: i32) -> (i32, i32) {
    %c0_i32 = arith.constant 0 : i32
    %c0_i32_0 = arith.constant 0 : i32
    %c0_i32_1 = arith.constant 0 : i32
    return %c0_i32, %c0_i32_0 : i32, i32
  }
  func.func @transform_4(%arg0: i32) -> (i32, i32) {
    %c0_i32 = arith.constant 0 : i32
    %c0_i32_0 = arith.constant 0 : i32
    %c0_i32_1 = arith.constant 0 : i32
    return %c0_i32, %c0_i32_0 : i32, i32
  }
  func.func @transform_5(%arg0: i32) -> (i32, i32) {
    %c0_i32 = arith.constant 0 : i32
    %c0_i32_0 = arith.constant 0 : i32
    %c0_i32_1 = arith.constant 0 : i32
    return %c0_i32, %c0_i32_0 : i32, i32
  }
  func.func @transform_6(%arg0: i32) -> (i32, i32) {
    %c0_i32 = arith.constant 0 : i32
    %c0_i32_0 = arith.constant 0 : i32
    %c0_i32_1 = arith.constant 0 : i32
    return %c0_i32, %c0_i32_0 : i32, i32
  }
  func.func @transform_7(%arg0: i32) -> (i32, i32) {
    %c0_i32 = arith.constant 0 : i32
    %c0_i32_0 = arith.constant 0 : i32
    return %arg0, %c0_i32 : i32, i32
  }
  func.func @transform_8(%arg0: i32) -> (i32, i32) {
    %c0_i32 = arith.constant 0 : i32
    %c0_i32_0 = arith.constant 0 : i32
    %c0_i32_1 = arith.constant 0 : i32
    return %c0_i32, %c0_i32_0 : i32, i32
  }
}

</mosaic_0001>

<llo_original>
// kernel: losses_forward.1
$region0: #{losses_forward.1}
  #allocation0 [shape = 'u32[]', space=smem, size = 0x4, offset = 0x4, fixed_abs, tag = 'smem constant byte address 0x4 - core index']
  #allocation1 [shape = 'u32[144,128]{1,0:T(1,128)}', space=vmem, size = 0x12000, scoped, tag = 'internal scratch']
  #allocation2 [shape = 'bf16[8,512]{1,0:T(8,128)(2,1)}', space=vmem, size = 0x2000, scoped, tag = 'scratch operand']
  #allocation3 [shape = 'f32[8,1]{1,0:T(8,128)}', space=vmem, size = 0x1000, scoped, tag = 'scratch operand']
  #allocation4 [shape = 'f32[8,1]{1,0:T(8,128)}', space=vmem, size = 0x1000, scoped, tag = 'scratch operand']
  #allocation5 [shape = 'f32[8,1]{1,0:T(8,128)}', space=vmem, size = 0x1000, scoped, tag = 'scratch operand']
  %s0 = inlined_call_operand.vmem [shape: f32[8,128], index: 0, kind: input, shape index: {}]
  %s1 = inlined_call_operand.vmem [shape: s32[8,1], index: 1, kind: input, shape index: {}]
  %s2 = inlined_call_operand.vmem [shape: f32[8,512], index: 2, kind: input, shape index: {}]
  %s3 = inlined_call_operand.vmem [shape: f32[8,512], index: 3, kind: input, shape index: {}]
  %s4 = inlined_call_operand.vmem [shape: f32[1,8], index: 4, kind: input, shape index: {}]
  %s5 = inlined_call_operand.vmem [shape: s32[8,1], index: 5, kind: input, shape index: {}]
  %s6 = inlined_call_operand.vmem [shape: s32[8,1], index: 6, kind: input, shape index: {}]
  %s7 = inlined_call_operand.vmem [shape: bf16[1024,512], index: 7, kind: input, shape index: {}]
  %s8 = inlined_call_operand.vmem [shape: f32[1,128], index: 8, kind: output, shape index: {}]
  %s9 = sld [smem:[#allocation0]]
  $region73: #{losses_forward.1} parent=0
    _
  %s11 = ssub.s32 1, %s9
  %s12 = scalar_select 0, %s11, %s9
  loop: start=0, step=1, limit=6
  $region2: #{losses_forward.1} parent=0 // loop_pre_header
    _
  $region3: #{losses_forward.1} parent=0 // loop_header
    %s14 = sphi 0, %s18
    %p15 = scmp.ge.s32.totalorder %s14, 6
    %s22 = sphi 0, %s22
    %s24 = sphi 0, %s22
    %s25 = sphi 0, %s24
    %s39 = sphi 0, %s25
    %s43 = sphi 0, %s43
    %s45 = sphi 0, %s43
    %s46 = sphi 0, %s45
    %s60 = sphi 0, %s46
    %s64 = sphi 0, %s64
    %s66 = sphi 0, %s64
    %s67 = sphi 0, %s66
    %s81 = sphi 0, %s67
    %s85 = sphi 0, %s85
    %s87 = sphi 0, %s85
    %s88 = sphi 0, %s87
    %s102 = sphi 0, %s88
    %s106 = sphi 0, %s106
    %s108 = sphi 0, %s106
    %s109 = sphi 0, %s108
    %s123 = sphi 0, %s109
    %s127 = sphi 0, %s127
    %s129 = sphi 0, %s127
    %s130 = sphi 0, %s129
    %s144 = sphi 0, %s130
    %s148 = sphi 0, %s148
    %s150 = sphi 0, %s148
    %s151 = sphi 0, %s150
    %s165 = sphi 0, %s151
    %s171 = sphi 0, %s173
    %s174 = sphi 0, %s171
    %s175 = sphi 0, %s174
    %s191 = sphi 0, %s175
    %s195 = sphi 0, %s195
    %s197 = sphi 0, %s195
    %s198 = sphi 0, %s197
    %s212 = sphi 0, %s198
  $region4: #{losses_forward.1} parent=0 // loop_header_branch
    %17 = sbr.rel (%p15) target = $region8
  $region5: #{losses_forward.1} parent=0 // loop_body
    %s19 = ssub.s32 %s14, 1
    %s20 = ssub.s32 %s14, 2
    %s21 = sadd.s32 %s14, 1
    %s23 = sadd.s32 %s22, 1
    %p26 = scmp.eq.s32.totalorder %s14, 3
    %p27 = scmp.ne.s32.totalorder %s22, %s24
    %p28 = scmp.eq.s32.totalorder %s14, 0
    %p29 = por %p27, %p28
    %p30 = scmp.ne.s32.totalorder %s22, %s24
    %p31 = scmp.eq.s32.totalorder %s19, 3
    %p32 = por %p30, %p31
    %p33 = scmp.ne.s32.totalorder %s24, %s25
    %p34 = scmp.eq.s32.totalorder %s19, 0
    %p35 = por %p33, %p34
    %p36 = scmp.ne.s32.totalorder %s24, %s25
    %p37 = scmp.eq.s32.totalorder %s20, 3
    %p38 = por %p36, %p37
    %p40 = scmp.ne.s32.totalorder %s25, %s39
    %p41 = scmp.eq.s32.totalorder %s20, 0
    %p42 = por %p40, %p41
    %s44 = sadd.s32 %s43, 1
    %p47 = scmp.eq.s32.totalorder %s14, 3
    %p48 = scmp.ne.s32.totalorder %s43, %s45
    %p49 = scmp.eq.s32.totalorder %s14, 0
    %p50 = por %p48, %p49
    %p51 = scmp.ne.s32.totalorder %s43, %s45
    %p52 = scmp.eq.s32.totalorder %s19, 3
    %p53 = por %p51, %p52
    %p54 = scmp.ne.s32.totalorder %s45, %s46
    %p55 = scmp.eq.s32.totalorder %s19, 0
    %p56 = por %p54, %p55
    %p57 = scmp.ne.s32.totalorder %s45, %s46
    %p58 = scmp.eq.s32.totalorder %s20, 3
    %p59 = por %p57, %p58
    %p61 = scmp.ne.s32.totalorder %s46, %s60
    %p62 = scmp.eq.s32.totalorder %s20, 0
    %p63 = por %p61, %p62
    %s65 = sadd.s32 %s64, 1
    %p68 = scmp.eq.s32.totalorder %s14, 3
    %p69 = scmp.ne.s32.totalorder %s64, %s66
    %p70 = scmp.eq.s32.totalorder %s14, 0
    %p71 = por %p69, %p70
    %p72 = scmp.ne.s32.totalorder %s64, %s66
    %p73 = scmp.eq.s32.totalorder %s19, 3
    %p74 = por %p72, %p73
    %p75 = scmp.ne.s32.totalorder %s66, %s67
    %p76 = scmp.eq.s32.totalorder %s19, 0
    %p77 = por %p75, %p76
    %p78 = scmp.ne.s32.totalorder %s66, %s67
    %p79 = scmp.eq.s32.totalorder %s20, 3
    %p80 = por %p78, %p79
    %p82 = scmp.ne.s32.totalorder %s67, %s81
    %p83 = scmp.eq.s32.totalorder %s20, 0
    %p84 = por %p82, %p83
    %s86 = sadd.s32 %s85, 1
    %p89 = scmp.eq.s32.totalorder %s14, 3
    %p90 = scmp.ne.s32.totalorder %s85, %s87
    %p91 = scmp.eq.s32.totalorder %s14, 0
    %p92 = por %p90, %p91
    %p93 = scmp.ne.s32.totalorder %s85, %s87
    %p94 = scmp.eq.s32.totalorder %s19, 3
    %p95 = por %p93, %p94
    %p96 = scmp.ne.s32.totalorder %s87, %s88
    %p97 = scmp.eq.s32.totalorder %s19, 0
    %p98 = por %p96, %p97
    %p99 = scmp.ne.s32.totalorder %s87, %s88
    %p100 = scmp.eq.s32.totalorder %s20, 3
    %p101 = por %p99, %p100
    %p103 = scmp.ne.s32.totalorder %s88, %s102
    %p104 = scmp.eq.s32.totalorder %s20, 0
    %p105 = por %p103, %p104
    %s107 = sadd.s32 %s106, 1
    %p110 = scmp.eq.s32.totalorder %s14, 3
    %p111 = scmp.ne.s32.totalorder %s106, %s108
    %p112 = scmp.eq.s32.totalorder %s14, 0
    %p113 = por %p111, %p112
    %p114 = scmp.ne.s32.totalorder %s106, %s108
    %p115 = scmp.eq.s32.totalorder %s19, 3
    %p116 = por %p114, %p115
    %p117 = scmp.ne.s32.totalorder %s108, %s109
    %p118 = scmp.eq.s32.totalorder %s19, 0
    %p119 = por %p117, %p118
    %p120 = scmp.ne.s32.totalorder %s108, %s109
    %p121 = scmp.eq.s32.totalorder %s20, 3
    %p122 = por %p120, %p121
    %p124 = scmp.ne.s32.totalorder %s109, %s123
    %p125 = scmp.eq.s32.totalorder %s20, 0
    %p126 = por %p124, %p125
    %s128 = sadd.s32 %s127, 1
    %p131 = scmp.eq.s32.totalorder %s14, 3
    %p132 = scmp.ne.s32.totalorder %s127, %s129
    %p133 = scmp.eq.s32.totalorder %s14, 0
    %p134 = por %p132, %p133
    %p135 = scmp.ne.s32.totalorder %s127, %s129
    %p136 = scmp.eq.s32.totalorder %s19, 3
    %p137 = por %p135, %p136
    %p138 = scmp.ne.s32.totalorder %s129, %s130
    %p139 = scmp.eq.s32.totalorder %s19, 0
    %p140 = por %p138, %p139
    %p141 = scmp.ne.s32.totalorder %s129, %s130
    %p142 = scmp.eq.s32.totalorder %s20, 3
    %p143 = por %p141, %p142
    %p145 = scmp.ne.s32.totalorder %s130, %s144
    %p146 = scmp.eq.s32.totalorder %s20, 0
    %p147 = por %p145, %p146
    %s149 = sadd.s32 %s148, 1
    %p152 = scmp.eq.s32.totalorder %s14, 3
    %p153 = scmp.ne.s32.totalorder %s148, %s150
    %p154 = scmp.eq.s32.totalorder %s14, 0
    %p155 = por %p153, %p154
    %p156 = scmp.ne.s32.totalorder %s148, %s150
    %p157 = scmp.eq.s32.totalorder %s19, 3
    %p158 = por %p156, %p157
    %p159 = scmp.ne.s32.totalorder %s150, %s151
    %p160 = scmp.eq.s32.totalorder %s19, 0
    %p161 = por %p159, %p160
    %p162 = scmp.ne.s32.totalorder %s150, %s151
    %p163 = scmp.eq.s32.totalorder %s20, 3
    %p164 = por %p162, %p163
    %p166 = scmp.ne.s32.totalorder %s151, %s165
    %p167 = scmp.eq.s32.totalorder %s20, 0
    %p168 = por %p166, %p167
    %s169 = ssub.s32 %s14, %s21
    %p170 = scmp.eq.s32.totalorder %s169, 0
    %s172 = sadd.s32 %s171, 1
    %s173 = scalar_select %p170, %s171, %s172
    %p176 = pneg %p170
    %p177 = scmp.eq.s32.totalorder %s14, 3
    %p178 = por %p176, %p177
    %p179 = scmp.ne.s32.totalorder %s171, %s174
    %p180 = scmp.eq.s32.totalorder %s14, 0
    %p181 = por %p179, %p180
    %p182 = scmp.ne.s32.totalorder %s171, %s174
    %p183 = scmp.eq.s32.totalorder %s19, 3
    %p184 = por %p182, %p183
    %p185 = scmp.ne.s32.totalorder %s174, %s175
    %p186 = scmp.eq.s32.totalorder %s19, 0
    %p187 = por %p185, %p186
    %p188 = scmp.ne.s32.totalorder %s174, %s175
    %p189 = scmp.eq.s32.totalorder %s20, 3
    %p190 = por %p188, %p189
    %p192 = scmp.ne.s32.totalorder %s175, %s191
    %p193 = scmp.eq.s32.totalorder %s20, 0
    %p194 = por %p192, %p193
    %s196 = sadd.s32 %s195, 1
    %p199 = scmp.eq.s32.totalorder %s14, 3
    %p200 = scmp.ne.s32.totalorder %s195, %s197
    %p201 = scmp.eq.s32.totalorder %s14, 0
    %p202 = por %p200, %p201
    %p203 = scmp.ne.s32.totalorder %s195, %s197
    %p204 = scmp.eq.s32.totalorder %s19, 3
    %p205 = por %p203, %p204
    %p206 = scmp.ne.s32.totalorder %s197, %s198
    %p207 = scmp.eq.s32.totalorder %s19, 0
    %p208 = por %p206, %p207
    %p209 = scmp.ne.s32.totalorder %s197, %s198
    %p210 = scmp.eq.s32.totalorder %s20, 3
    %p211 = por %p209, %p210
    %p213 = scmp.ne.s32.totalorder %s198, %s212
    %p214 = scmp.eq.s32.totalorder %s20, 0
    %p215 = por %p213, %p214
    %p216 = scmp.le.s32.totalorder 1, %s14
    %p217 = scmp.lt.s32.totalorder %s14, 5
    %p218 = pnand %p216, %p217
    %p219 = pneg %p218
    // Predicated region
    $region9: #{losses_forward.1} parent=5 // pred_check
      _
    $region10: #{losses_forward.1} parent=5 // pred_check_branch
      %221 = sbr.rel (%p218) target = $region12
    $region11: #{losses_forward.1} parent=5 // pred_region
      %s222 = ssub.s32 %s14, 1
      // Predicated region
      $region13: #{losses_forward.1} parent=11 // pred_check
        %p223 = pneg %p35
      $region14: #{losses_forward.1} parent=11 // pred_check_branch
        %225 = sbr.rel (%p223) target = $region16
      $region15: #{losses_forward.1} parent=11 // pred_region
        _
      $region16: #{losses_forward.1} parent=11 // pred_fallthru
        _
      // Predicated region
      $region17: #{losses_forward.1} parent=11 // pred_check
        %p226 = pneg %p56
      $region18: #{losses_forward.1} parent=11 // pred_check_branch
        %228 = sbr.rel (%p226) target = $region20
      $region19: #{losses_forward.1} parent=11 // pred_region
        _
      $region20: #{losses_forward.1} parent=11 // pred_fallthru
        _
      // Predicated region
      $region21: #{losses_forward.1} parent=11 // pred_check
        %p229 = pneg %p77
      $region22: #{losses_forward.1} parent=11 // pred_check_branch
        %231 = sbr.rel (%p229) target = $region24
      $region23: #{losses_forward.1} parent=11 // pred_region
        _
      $region24: #{losses_forward.1} parent=11 // pred_fallthru
        _
      // Predicated region
      $region25: #{losses_forward.1} parent=11 // pred_check
        %p232 = pneg %p98
      $region26: #{losses_forward.1} parent=11 // pred_check_branch
        %234 = sbr.rel (%p232) target = $region28
      $region27: #{losses_forward.1} parent=11 // pred_region
        _
      $region28: #{losses_forward.1} parent=11 // pred_fallthru
        _
      // Predicated region
      $region29: #{losses_forward.1} parent=11 // pred_check
        %p235 = pneg %p119
      $region30: #{losses_forward.1} parent=11 // pred_check_branch
        %237 = sbr.rel (%p235) target = $region32
      $region31: #{losses_forward.1} parent=11 // pred_region
        _
      $region32: #{losses_forward.1} parent=11 // pred_fallthru
        _
      // Predicated region
      $region33: #{losses_forward.1} parent=11 // pred_check
        %p238 = pneg %p140
      $region34: #{losses_forward.1} parent=11 // pred_check_branch
        %240 = sbr.rel (%p238) target = $region36
      $region35: #{losses_forward.1} parent=11 // pred_region
        _
      $region36: #{losses_forward.1} parent=11 // pred_fallthru
        _
      // Predicated region
      $region37: #{losses_forward.1} parent=11 // pred_check
        %p241 = pneg %p161
      $region38: #{losses_forward.1} parent=11 // pred_check_branch
        %243 = sbr.rel (%p241) target = $region40
      $region39: #{losses_forward.1} parent=11 // pred_region
        _
      $region40: #{losses_forward.1} parent=11 // pred_fallthru
        _
    $region12: #{losses_forward.1} parent=5 // pred_fallthru
      _
    %p244 = scmp.lt.s32.totalorder %s14, 4
    // Predicated region
    $region41: #{losses_forward.1} parent=5 // pred_check
      %p245 = pneg %p244
    $region42: #{losses_forward.1} parent=5 // pred_check_branch
      %247 = sbr.rel (%p245) target = $region44
    $region43: #{losses_forward.1} parent=5 // pred_region
      // Predicated region
      $region45: #{losses_forward.1} parent=43 // pred_check
        %p248 = pneg %p181
      $region46: #{losses_forward.1} parent=43 // pred_check_branch
        %250 = sbr.rel (%p248) target = $region48
      $region47: #{losses_forward.1} parent=43 // pred_region
        %s251 = smul.u32 32, %s14
        %p252 = scmp.lt.s32.totalorder %s251, 127
        %s253 = scalar_select %p252, %s251, 127
        %s254 = smul.addr %s253, 4
        %s255 = smul.addr %s254, 4
        %s256 = scalar_lea.vmem %s7, %s255
        %s257 = smul.u32 32, %s14
      $region48: #{losses_forward.1} parent=43 // pred_fallthru
        _
    $region44: #{losses_forward.1} parent=5 // pred_fallthru
      _
    %p258 = scmp.le.s32.totalorder 1, %s14
    %p259 = scmp.lt.s32.totalorder %s14, 5
    %p260 = pnand %p258, %p259
    %p261 = pneg %p260
    // Predicated region
    $region49: #{losses_forward.1} parent=5 // pred_check
      _
    $region50: #{losses_forward.1} parent=5 // pred_check_branch
      %263 = sbr.rel (%p260) target = $region52
    $region51: #{losses_forward.1} parent=5 // pred_region
      %s264 = ssub.s32 %s14, 1
      %p265 = pneg %p35
      %p266 = pneg %p32
      %p267 = pneg %p56
      %p268 = pneg %p53
      %p269 = pneg %p77
      %p270 = pneg %p74
      %p271 = pneg %p98
      %p272 = pneg %p95
      %p273 = pneg %p119
      %p274 = pneg %p116
      %p275 = pneg %p140
      %p276 = pneg %p137
      %p277 = pneg %p161
      %p278 = pneg %p158
      %s279 = smul.u32 32, %s19
      %p280 = scmp.lt.s32.totalorder %s279, 127
      %s281 = scalar_select %p280, %s279, 127
      %s282 = smul.addr %s281, 4
      %s283 = smul.addr %s282, 4
      %s284 = scalar_lea.vmem %s7, %s283
      %p285 = pneg %p187
      %p286 = pneg %p184
      %p287 = pneg %p208
      %p288 = pneg %p205
      %s289 = smul.u32 32, %s19
      %p290 = scmp.lt.s32.totalorder %s289, 127
      %s291 = scalar_select %p290, %s289, 127
      %s292 = smul.addr %s291, 4
      %s293 = smul.addr %s292, 4
      %s294 = scalar_lea.vmem %s7, %s293
      %s295 = smul.u32 32, %s19
      %p297 = scmp.eq.s32.totalorder %s19, 0
      // Predicated region
      $region53: #{losses_forward.1} parent=51 // pred_check
        %p298 = pneg %p297
      $region54: #{losses_forward.1} parent=51 // pred_check_branch
        %300 = sbr.rel (%p298) target = $region56
      $region55: #{losses_forward.1} parent=51 // pred_region
        %v301 = vld [vmem:[%s2] sm:$0xff]
        %v302 = vld [vmem:[%s2 + $0x8] sm:$0xff]
        %v303 = vld [vmem:[%s2 + $0x10] sm:$0xff]
        %v304 = vld [vmem:[%s2 + $0x18] sm:$0xff]
        %v305 = vmul.f32 %v301, %v301
        %v306 = vmul.f32 %v302, %v302
        %v307 = vmul.f32 %v303, %v303
        %v308 = vmul.f32 %v304, %v304
        %v309 = vadd.f32 %v305, %v306
        %v310 = vadd.f32 %v309, %v307
        %v311 = vadd.f32 %v310, %v308
        %312 = vadd.xlane.f32.xlu0 %v311
        %v313 = vpop.xlane.xlu0 %312
        %v314 = vrsqrt.pop %v313
        %v315 = vmul.f32 %v313, %v314
        %vm316 = vcmp.eq.f32.partialorder %v313, inf
        %v317 = vsel %vm316, %v313, %v315
        %vm318 = vcmp.eq.f32.partialorder %v313, 0.0
        %v319 = vand.u32 %v313, 2147483648
        %v320 = vsel %vm318, %v319, %v317
        %v321 = vmax.f32 %v320, 1e-12
        %v322 = vrcp.pop %v321
        %v323 = vmul.f32 1.0, %v322
        %v324 = vmul.f32 %v323, 20.0
        %v325 = vmul.f32 %v301, %v324
        %v326 = vmul.f32 %v302, %v324
        %v327 = vmul.f32 %v303, %v324
        %v328 = vmul.f32 %v304, %v324
        %v329 = vpack.c.bf16 %v325, %v325
        %v330 = vpack.c.bf16 %v326, %v326
        %v331 = vpack.c.bf16 %v327, %v327
        %v332 = vpack.c.bf16 %v328, %v328
        %v337 = vunpack.c.l.b16 %v329
        %v338 = vunpack.c.l.b16 %v330
        %v339 = vunpack.c.l.b16 %v331
        %v340 = vunpack.c.l.b16 %v332
        %v341 = vpack.c.b16 %v338, %v337
        %v342 = vpack.c.b16 %v340, %v339
        %345 = vst [vmem:[#allocation2] sm:$0xff] %v341
        %346 = vst [vmem:[#allocation2 + $0x8] sm:$0xff] %v342
        %vm347 = vcmask 7168
        %348 = vst.msk [vmem:[#allocation3] sm:$0xff] %vm347, -1e+30
        %349 = vst.msk [vmem:[#allocation4] sm:$0xff] %vm347, 0.0
        %350 = vst.msk [vmem:[#allocation5] sm:$0xff] %vm347, 0.0
      $region56: #{losses_forward.1} parent=51 // pred_fallthru
        _
      %v351 = vld [vmem:[#allocation2] sm:$0xff]
      %v352 = vld [vmem:[#allocation2 + $0x8] sm:$0xff]
      %v353 = vld [vmem:[%s294] sm:$0xff]
      %v354 = vld [vmem:[%s294 + $0x8] sm:$0xff]
      %v355 = vld [vmem:[%s294 + $0x10] sm:$0xff]
      %v356 = vld [vmem:[%s294 + $0x18] sm:$0xff]
      %v357 = vld [vmem:[%s294 + $0x20] sm:$0xff]
      %v358 = vld [vmem:[%s294 + $0x28] sm:$0xff]
      %v359 = vld [vmem:[%s294 + $0x30] sm:$0xff]
      %v360 = vld [vmem:[%s294 + $0x38] sm:$0xff]
      %v361 = vld [vmem:[%s294 + $0x40] sm:$0xff]
      %v362 = vld [vmem:[%s294 + $0x48] sm:$0xff]
      %v363 = vld [vmem:[%s294 + $0x50] sm:$0xff]
      %v364 = vld [vmem:[%s294 + $0x58] sm:$0xff]
      %v365 = vld [vmem:[%s294 + $0x60] sm:$0xff]
      %v366 = vld [vmem:[%s294 + $0x68] sm:$0xff]
      %v367 = vld [vmem:[%s294 + $0x70] sm:$0xff]
      %v368 = vld [vmem:[%s294 + $0x78] sm:$0xff]
      %v369 = vld [vmem:[%s294 + $0x80] sm:$0xff]
      %v370 = vld [vmem:[%s294 + $0x88] sm:$0xff]
      %v371 = vld [vmem:[%s294 + $0x90] sm:$0xff]
      %v372 = vld [vmem:[%s294 + $0x98] sm:$0xff]
      %v373 = vld [vmem:[%s294 + $0xa0] sm:$0xff]
      %v374 = vld [vmem:[%s294 + $0xa8] sm:$0xff]
      %v375 = vld [vmem:[%s294 + $0xb0] sm:$0xff]
      %v376 = vld [vmem:[%s294 + $0xb8] sm:$0xff]
      %v377 = vld [vmem:[%s294 + $0xc0] sm:$0xff]
      %v378 = vld [vmem:[%s294 + $0xc8] sm:$0xff]
      %v379 = vld [vmem:[%s294 + $0xd0] sm:$0xff]
      %v380 = vld [vmem:[%s294 + $0xd8] sm:$0xff]
      %v381 = vld [vmem:[%s294 + $0xe0] sm:$0xff]
      %v382 = vld [vmem:[%s294 + $0xe8] sm:$0xff]
      %v383 = vld [vmem:[%s294 + $0xf0] sm:$0xff]
      %v384 = vld [vmem:[%s294 + $0xf8] sm:$0xff]
      %v385 = vld [vmem:[%s294 + $0x100] sm:$0xff]
      %v386 = vld [vmem:[%s294 + $0x108] sm:$0xff]
      %v387 = vld [vmem:[%s294 + $0x110] sm:$0xff]
      %v388 = vld [vmem:[%s294 + $0x118] sm:$0xff]
      %v389 = vld [vmem:[%s294 + $0x120] sm:$0xff]
      %v390 = vld [vmem:[%s294 + $0x128] sm:$0xff]
      %v391 = vld [vmem:[%s294 + $0x130] sm:$0xff]
      %v392 = vld [vmem:[%s294 + $0x138] sm:$0xff]
      %v393 = vld [vmem:[%s294 + $0x140] sm:$0xff]
      %v394 = vld [vmem:[%s294 + $0x148] sm:$0xff]
      %v395 = vld [vmem:[%s294 + $0x150] sm:$0xff]
      %v396 = vld [vmem:[%s294 + $0x158] sm:$0xff]
      %v397 = vld [vmem:[%s294 + $0x160] sm:$0xff]
      %v398 = vld [vmem:[%s294 + $0x168] sm:$0xff]
      %v399 = vld [vmem:[%s294 + $0x170] sm:$0xff]
      %v400 = vld [vmem:[%s294 + $0x178] sm:$0xff]
      %v401 = vld [vmem:[%s294 + $0x180] sm:$0xff]
      %v402 = vld [vmem:[%s294 + $0x188] sm:$0xff]
      %v403 = vld [vmem:[%s294 + $0x190] sm:$0xff]
      %v404 = vld [vmem:[%s294 + $0x198] sm:$0xff]
      %v405 = vld [vmem:[%s294 + $0x1a0] sm:$0xff]
      %v406 = vld [vmem:[%s294 + $0x1a8] sm:$0xff]
      %v407 = vld [vmem:[%s294 + $0x1b0] sm:$0xff]
      %v408 = vld [vmem:[%s294 + $0x1b8] sm:$0xff]
      %v409 = vld [vmem:[%s294 + $0x1c0] sm:$0xff]
      %v410 = vld [vmem:[%s294 + $0x1c8] sm:$0xff]
      %v411 = vld [vmem:[%s294 + $0x1d0] sm:$0xff]
      %v412 = vld [vmem:[%s294 + $0x1d8] sm:$0xff]
      %v413 = vld [vmem:[%s294 + $0x1e0] sm:$0xff]
      %v414 = vld [vmem:[%s294 + $0x1e8] sm:$0xff]
      %v415 = vld [vmem:[%s294 + $0x1f0] sm:$0xff]
      %v416 = vld [vmem:[%s294 + $0x1f8] sm:$0xff]
      %v419 = vunpack.c.l.b16 %v351
      %v420 = vunpack.c.h.b16 %v351
      %v421 = vunpack.c.l.b16 %v352
      %v422 = vunpack.c.h.b16 %v352
      %v423 = vpack.c.b16 %v419, %v419
      %v424 = vpack.c.b16 %v420, %v420
      %v425 = vpack.c.b16 %v421, %v421
      %v426 = vpack.c.b16 %v422, %v422
      %v495 = vunpack.c.l.b16 %v353
      %v496 = vunpack.c.h.b16 %v353
      %v497 = vunpack.c.l.b16 %v354
      %v498 = vunpack.c.h.b16 %v354
      %v499 = vunpack.c.l.b16 %v355
      %v500 = vunpack.c.h.b16 %v355
      %v501 = vunpack.c.l.b16 %v356
      %v502 = vunpack.c.h.b16 %v356
      %v503 = vunpack.c.l.b16 %v357
      %v504 = vunpack.c.h.b16 %v357
      %v505 = vunpack.c.l.b16 %v358
      %v506 = vunpack.c.h.b16 %v358
      %v507 = vunpack.c.l.b16 %v359
      %v508 = vunpack.c.h.b16 %v359
      %v509 = vunpack.c.l.b16 %v360
      %v510 = vunpack.c.h.b16 %v360
      %v511 = vunpack.c.l.b16 %v361
      %v512 = vunpack.c.h.b16 %v361
      %v513 = vunpack.c.l.b16 %v362
      %v514 = vunpack.c.h.b16 %v362
      %v515 = vunpack.c.l.b16 %v363
      %v516 = vunpack.c.h.b16 %v363
      %v517 = vunpack.c.l.b16 %v364
      %v518 = vunpack.c.h.b16 %v364
      %v519 = vunpack.c.l.b16 %v365
      %v520 = vunpack.c.h.b16 %v365
      %v521 = vunpack.c.l.b16 %v366
      %v522 = vunpack.c.h.b16 %v366
      %v523 = vunpack.c.l.b16 %v367
      %v524 = vunpack.c.h.b16 %v367
      %v525 = vunpack.c.l.b16 %v368
      %v526 = vunpack.c.h.b16 %v368
      %v527 = vunpack.c.l.b16 %v369
      %v528 = vunpack.c.h.b16 %v369
      %v529 = vunpack.c.l.b16 %v370
      %v530 = vunpack.c.h.b16 %v370
      %v531 = vunpack.c.l.b16 %v371
      %v532 = vunpack.c.h.b16 %v371
      %v533 = vunpack.c.l.b16 %v372
      %v534 = vunpack.c.h.b16 %v372
      %v535 = vunpack.c.l.b16 %v373
      %v536 = vunpack.c.h.b16 %v373
      %v537 = vunpack.c.l.b16 %v374
      %v538 = vunpack.c.h.b16 %v374
      %v539 = vunpack.c.l.b16 %v375
      %v540 = vunpack.c.h.b16 %v375
      %v541 = vunpack.c.l.b16 %v376
      %v542 = vunpack.c.h.b16 %v376
      %v543 = vunpack.c.l.b16 %v377
      %v544 = vunpack.c.h.b16 %v377
      %v545 = vunpack.c.l.b16 %v378
      %v546 = vunpack.c.h.b16 %v378
      %v547 = vunpack.c.l.b16 %v379
      %v548 = vunpack.c.h.b16 %v379
      %v549 = vunpack.c.l.b16 %v380
      %v550 = vunpack.c.h.b16 %v380
      %v551 = vunpack.c.l.b16 %v381
      %v552 = vunpack.c.h.b16 %v381
      %v553 = vunpack.c.l.b16 %v382
      %v554 = vunpack.c.h.b16 %v382
      %v555 = vunpack.c.l.b16 %v383
      %v556 = vunpack.c.h.b16 %v383
      %v557 = vunpack.c.l.b16 %v384
      %v558 = vunpack.c.h.b16 %v384
      %v559 = vunpack.c.l.b16 %v385
      %v560 = vunpack.c.h.b16 %v385
      %v561 = vunpack.c.l.b16 %v386
      %v562 = vunpack.c.h.b16 %v386
      %v563 = vunpack.c.l.b16 %v387
      %v564 = vunpack.c.h.b16 %v387
      %v565 = vunpack.c.l.b16 %v388
      %v566 = vunpack.c.h.b16 %v388
      %v567 = vunpack.c.l.b16 %v389
      %v568 = vunpack.c.h.b16 %v389
      %v569 = vunpack.c.l.b16 %v390
      %v570 = vunpack.c.h.b16 %v390
      %v571 = vunpack.c.l.b16 %v391
      %v572 = vunpack.c.h.b16 %v391
      %v573 = vunpack.c.l.b16 %v392
      %v574 = vunpack.c.h.b16 %v392
      %v575 = vunpack.c.l.b16 %v393
      %v576 = vunpack.c.h.b16 %v393
      %v577 = vunpack.c.l.b16 %v394
      %v578 = vunpack.c.h.b16 %v394
      %v579 = vunpack.c.l.b16 %v395
      %v580 = vunpack.c.h.b16 %v395
      %v581 = vunpack.c.l.b16 %v396
      %v582 = vunpack.c.h.b16 %v396
      %v583 = vunpack.c.l.b16 %v397
      %v584 = vunpack.c.h.b16 %v397
      %v585 = vunpack.c.l.b16 %v398
      %v586 = vunpack.c.h.b16 %v398
      %v587 = vunpack.c.l.b16 %v399
      %v588 = vunpack.c.h.b16 %v399
      %v589 = vunpack.c.l.b16 %v400
      %v590 = vunpack.c.h.b16 %v400
      %v591 = vunpack.c.l.b16 %v401
      %v592 = vunpack.c.h.b16 %v401
      %v593 = vunpack.c.l.b16 %v402
      %v594 = vunpack.c.h.b16 %v402
      %v595 = vunpack.c.l.b16 %v403
      %v596 = vunpack.c.h.b16 %v403
      %v597 = vunpack.c.l.b16 %v404
      %v598 = vunpack.c.h.b16 %v404
      %v599 = vunpack.c.l.b16 %v405
      %v600 = vunpack.c.h.b16 %v405
      %v601 = vunpack.c.l.b16 %v406
      %v602 = vunpack.c.h.b16 %v406
      %v603 = vunpack.c.l.b16 %v407
      %v604 = vunpack.c.h.b16 %v407
      %v605 = vunpack.c.l.b16 %v408
      %v606 = vunpack.c.h.b16 %v408
      %v607 = vunpack.c.l.b16 %v409
      %v608 = vunpack.c.h.b16 %v409
      %v609 = vunpack.c.l.b16 %v410
      %v610 = vunpack.c.h.b16 %v410
      %v611 = vunpack.c.l.b16 %v411
      %v612 = vunpack.c.h.b16 %v411
      %v613 = vunpack.c.l.b16 %v412
      %v614 = vunpack.c.h.b16 %v412
      %v615 = vunpack.c.l.b16 %v413
      %v616 = vunpack.c.h.b16 %v413
      %v617 = vunpack.c.l.b16 %v414
      %v618 = vunpack.c.h.b16 %v414
      %v619 = vunpack.c.l.b16 %v415
      %v620 = vunpack.c.h.b16 %v415
      %v621 = vunpack.c.l.b16 %v416
      %v622 = vunpack.c.h.b16 %v416
      %v623 = vpack.c.b16 %v499, %v495
      %v624 = vpack.c.b16 %v500, %v496
      %v625 = vpack.c.b16 %v501, %v497
      %v626 = vpack.c.b16 %v502, %v498
      %v627 = vpack.c.b16 %v507, %v503
      %v628 = vpack.c.b16 %v508, %v504
      %v629 = vpack.c.b16 %v509, %v505
      %v630 = vpack.c.b16 %v510, %v506
      %v631 = vpack.c.b16 %v515, %v511
      %v632 = vpack.c.b16 %v516, %v512
      %v633 = vpack.c.b16 %v517, %v513
      %v634 = vpack.c.b16 %v518, %v514
      %v635 = vpack.c.b16 %v523, %v519
      %v636 = vpack.c.b16 %v524, %v520
      %v637 = vpack.c.b16 %v525, %v521
      %v638 = vpack.c.b16 %v526, %v522
      %v639 = vpack.c.b16 %v531, %v527
      %v640 = vpack.c.b16 %v532, %v528
      %v641 = vpack.c.b16 %v533, %v529
      %v642 = vpack.c.b16 %v534, %v530
      %v643 = vpack.c.b16 %v539, %v535
      %v644 = vpack.c.b16 %v540, %v536
      %v645 = vpack.c.b16 %v541, %v537
      %v646 = vpack.c.b16 %v542, %v538
      %v647 = vpack.c.b16 %v547, %v543
      %v648 = vpack.c.b16 %v548, %v544
      %v649 = vpack.c.b16 %v549, %v545
      %v650 = vpack.c.b16 %v550, %v546
      %v651 = vpack.c.b16 %v555, %v551
      %v652 = vpack.c.b16 %v556, %v552
      %v653 = vpack.c.b16 %v557, %v553
      %v654 = vpack.c.b16 %v558, %v554
      %v655 = vpack.c.b16 %v563, %v559
      %v656 = vpack.c.b16 %v564, %v560
      %v657 = vpack.c.b16 %v565, %v561
      %v658 = vpack.c.b16 %v566, %v562
      %v659 = vpack.c.b16 %v571, %v567
      %v660 = vpack.c.b16 %v572, %v568
      %v661 = vpack.c.b16 %v573, %v569
      %v662 = vpack.c.b16 %v574, %v570
      %v663 = vpack.c.b16 %v579, %v575
      %v664 = vpack.c.b16 %v580, %v576
      %v665 = vpack.c.b16 %v581, %v577
      %v666 = vpack.c.b16 %v582, %v578
      %v667 = vpack.c.b16 %v587, %v583
      %v668 = vpack.c.b16 %v588, %v584
      %v669 = vpack.c.b16 %v589, %v585
      %v670 = vpack.c.b16 %v590, %v586
      %v671 = vpack.c.b16 %v595, %v591
      %v672 = vpack.c.b16 %v596, %v592
      %v673 = vpack.c.b16 %v597, %v593
      %v674 = vpack.c.b16 %v598, %v594
      %v675 = vpack.c.b16 %v603, %v599
      %v676 = vpack.c.b16 %v604, %v600
      %v677 = vpack.c.b16 %v605, %v601
      %v678 = vpack.c.b16 %v606, %v602
      %v679 = vpack.c.b16 %v611, %v607
      %v680 = vpack.c.b16 %v612, %v608
      %v681 = vpack.c.b16 %v613, %v609
      %v682 = vpack.c.b16 %v614, %v610
      %v683 = vpack.c.b16 %v619, %v615
      %v684 = vpack.c.b16 %v620, %v616
      %v685 = vpack.c.b16 %v621, %v617
      %v686 = vpack.c.b16 %v622, %v618
      %751 = vmatprep.subr.bf16.mxu0 %v652
      %752 = vmatpush1.bf16.xpose.msra.mxu0 %v651
      %753 = vmatprep.subr.bf16.mxu0 %v648
      %754 = vmatpush1.bf16.xpose.msra.mxu0 %v647
      %755 = vmatprep.subr.bf16.mxu0 %v644
      %756 = vmatpush1.bf16.xpose.msra.mxu0 %v643
      %757 = vmatprep.subr.bf16.mxu0 %v640
      %758 = vmatpush1.bf16.xpose.msra.mxu0 %v639
      %759 = vmatprep.subr.bf16.mxu0 %v636
      %760 = vmatpush1.bf16.xpose.msra.mxu0 %v635
      %761 = vmatprep.subr.bf16.mxu0 %v632
      %762 = vmatpush1.bf16.xpose.msra.mxu0 %v631
      %763 = vmatprep.subr.bf16.mxu0 %v628
      %764 = vmatpush1.bf16.xpose.msra.mxu0 %v627
      %765 = vmatprep.subr.bf16.mxu0 %v624
      %766 = vmatpush1.bf16.xpose.msra.mxu0 %v623
      %767 = vmatprep.subr.bf16.mxu0 %v684
      %768 = vmatpush2.bf16.xpose.msra.mxu0 %v683
      %769 = vmatprep.subr.bf16.mxu0 %v680
      %770 = vmatpush2.bf16.xpose.msra.mxu0 %v679
      %771 = vmatprep.subr.bf16.mxu0 %v676
      %772 = vmatpush2.bf16.xpose.msra.mxu0 %v675
      %773 = vmatprep.subr.bf16.mxu0 %v672
      %774 = vmatpush2.bf16.xpose.msra.mxu0 %v671
      %775 = vmatprep.subr.bf16.mxu0 %v668
      %776 = vmatpush2.bf16.xpose.msra.mxu0 %v667
      %777 = vmatprep.subr.bf16.mxu0 %v664
      %778 = vmatpush2.bf16.xpose.msra.mxu0 %v663
      %779 = vmatprep.subr.bf16.mxu0 %v660
      %780 = vmatpush2.bf16.xpose.msra.mxu0 %v659
      %781 = vmatprep.subr.bf16.mxu0 %v656
      %782 = vmatpush2.bf16.xpose.msra.mxu0 %v655
      %783 = vmatprep.mubr.bf16.mxu0 %v424
      %784 = vmatmul.mubr.bf16.gmra.mxu0 %v423
      %v785 = vpop.f32.mrf.mxu0
      %v786 = vadd.f32 0.0, %v785
      %v787 = vpop.f32.mrf.mxu0
      %v788 = vadd.f32 0.0, %v787
      %v789 = vpop.f32.mrf.mxu0
      %v790 = vpop.f32.mrf.mxu0
      %791 = vdwg.mxu0
      %792 = vmatprep.subr.bf16.mxu0 %v654
      %793 = vmatpush1.bf16.xpose.msra.mxu0 %v653
      %794 = vmatprep.subr.bf16.mxu0 %v650
      %795 = vmatpush1.bf16.xpose.msra.mxu0 %v649
      %796 = vmatprep.subr.bf16.mxu0 %v646
      %797 = vmatpush1.bf16.xpose.msra.mxu0 %v645
      %798 = vmatprep.subr.bf16.mxu0 %v642
      %799 = vmatpush1.bf16.xpose.msra.mxu0 %v641
      %800 = vmatprep.subr.bf16.mxu0 %v638
      %801 = vmatpush1.bf16.xpose.msra.mxu0 %v637
      %802 = vmatprep.subr.bf16.mxu0 %v634
      %803 = vmatpush1.bf16.xpose.msra.mxu0 %v633
      %804 = vmatprep.subr.bf16.mxu0 %v630
      %805 = vmatpush1.bf16.xpose.msra.mxu0 %v629
      %806 = vmatprep.subr.bf16.mxu0 %v626
      %807 = vmatpush1.bf16.xpose.msra.mxu0 %v625
      %808 = vmatprep.subr.bf16.mxu0 %v686
      %809 = vmatpush2.bf16.xpose.msra.mxu0 %v685
      %810 = vmatprep.subr.bf16.mxu0 %v682
      %811 = vmatpush2.bf16.xpose.msra.mxu0 %v681
      %812 = vmatprep.subr.bf16.mxu0 %v678
      %813 = vmatpush2.bf16.xpose.msra.mxu0 %v677
      %814 = vmatprep.subr.bf16.mxu0 %v674
      %815 = vmatpush2.bf16.xpose.msra.mxu0 %v673
      %816 = vmatprep.subr.bf16.mxu0 %v670
      %817 = vmatpush2.bf16.xpose.msra.mxu0 %v669
      %818 = vmatprep.subr.bf16.mxu0 %v666
      %819 = vmatpush2.bf16.xpose.msra.mxu0 %v665
      %820 = vmatprep.subr.bf16.mxu0 %v662
      %821 = vmatpush2.bf16.xpose.msra.mxu0 %v661
      %822 = vmatprep.subr.bf16.mxu0 %v658
      %823 = vmatpush2.bf16.xpose.msra.mxu0 %v657
      %824 = vmatprep.mubr.bf16.mxu0 %v426
      %825 = vmatmul.mubr.bf16.gmra.mxu0 %v425
      %v826 = vpop.f32.mrf.mxu0
      %v827 = vadd.f32 %v786, %v826
      %v828 = vpop.f32.mrf.mxu0
      %v829 = vadd.f32 %v788, %v828
      %v830 = vpop.f32.mrf.mxu0
      %v831 = vpop.f32.mrf.mxu0
      %832 = vdwg.mxu0
      %v833 = vlaneseq
      %v834 = vand.u32 %v833, 127
      %v835 = vadd.s32 %v834, 128
      %s836 = smul.u32 %s19, 256
      %v837 = vstv %s836
      %v838 = vadd.s32 %v834, %v837
      %v839 = vadd.s32 %v835, %v837
      %v840 = vld [vmem:[#allocation3] sm:$0xff]
      %v841 = vmax.f32 %v827, %v829
      %842 = vmax.xlane.f32.xlu0 %v841
      %v843 = vpop.xlane.xlu0 %842
      %v844 = vmax.f32 %v840, %v843
      %v845 = vsub.f32 %v840, %v844
      %v846 = vmul.f32 %v845, 1.442695
      %v847 = vpow.pop %v846
      %849 = vset.pattern.permute.xlu0 0
      %850 = vperm.xlu0 %849, %v844
      %v851 = vpop.permute.xlu0 %850
      %v853 = vsub.f32 %v827, %v851
      %v854 = vsub.f32 %v829, %v851
      %v855 = vmul.f32 %v853, 1.442695
      %v856 = vpow.pop %v855
      %v857 = vmul.f32 %v854, 1.442695
      %v858 = vpow.pop %v857
      %v859 = vld [vmem:[#allocation4] sm:$0xff]
      %v860 = vmul.f32 %v847, %v859
      %v861 = vadd.f32 %v856, %v858
      %862 = vadd.xlane.f32.xlu0 %v861
      %v863 = vpop.xlane.xlu0 %862
      %v864 = vadd.f32 %v860, %v863
      %vm865 = vcmask 7168
      %866 = vst.msk [vmem:[#allocation4] sm:$0xff] %vm865, %v864
      %867 = vst.msk [vmem:[#allocation3] sm:$0xff] %vm865, %v844
      %v868 = vld [vmem:[%s6] sm:$0xff]
      %869 = vset.pattern.permute.xlu0 0
      %870 = vperm.xlu0 %869, %v868
      %v871 = vpop.permute.xlu0 %870
      %vm872 = vcmp.eq.s32.totalorder %v838, %v871
      %vm873 = vcmp.eq.s32.totalorder %v839, %v871
      %v874 = vld [vmem:[#allocation5] sm:$0xff]
      %v875 = vsel %vm872, %v827, 0.0
      %v876 = vsel %vm873, %v829, 0.0
      %v877 = vadd.f32 %v875, %v876
      %878 = vadd.xlane.f32.xlu0 %v877
      %v879 = vpop.xlane.xlu0 %878
      %v880 = vadd.f32 %v874, %v879
      %881 = vst.msk [vmem:[#allocation5] sm:$0xff] %vm865, %v880
      %p882 = scmp.eq.s32.totalorder %s19, 3
      // Predicated region
      $region57: #{losses_forward.1} parent=51 // pred_check
        %p883 = pneg %p882
      $region58: #{losses_forward.1} parent=51 // pred_check_branch
        %885 = sbr.rel (%p883) target = $region60
      $region59: #{losses_forward.1} parent=51 // pred_region
        %v886 = vld [vmem:[#allocation3] sm:$0xff]
        %v887 = vld [vmem:[#allocation4] sm:$0xff]
        %v888 = vlog2.pop %v887
        %v889 = vmul.f32 %v888, 0.6931472
        %v890 = vadd.f32 %v886, %v889
        %v891 = vld [vmem:[#allocation5] sm:$0xff]
        %v892 = vsub.f32 %v890, %v891
        %v893 = vsel %vm865, %v892, 0.0
        %894 = vadd.xlane.f32.xlu0 %v893
        %v895 = vpop.xlane.xlu0 %894
        %v896 = vrot.slane %v895, 4
        %v897 = vadd.f32 %v895, %v896
        %v898 = vrot.slane %v897, 2
        %v899 = vadd.f32 %v897, %v898
        %v900 = vrot.slane %v899, 1
        %v901 = vadd.f32 %v899, %v900
        %s902 = vtos %v901
        %s903 = smul.f32 %s902, 0.125
        %v904 = vld [vmem:[%s0] sm:$0xff]
        %905 = vmax.xlane.f32.xlu0 %v904
        %v906 = vpop.xlane.xlu0 %905
        %v907 = vsub.f32 %v904, %v906
        %v908 = vmul.f32 %v907, 1.442695
        %v909 = vpow.pop %v908
        %910 = vadd.xlane.f32.xlu0 %v909
        %v911 = vpop.xlane.xlu0 %910
        %v912 = vlog2.pop %v911
        %v913 = vmul.f32 %v912, 0.6931472
        %v914 = vadd.f32 %v906, %v913
        %v915 = vld [vmem:[%s1] sm:$0xff]
        %916 = vset.pattern.permute.xlu0 0
        %917 = vperm.xlu0 %916, %v915
        %v918 = vpop.permute.xlu0 %917
        %vm919 = vcmp.eq.s32.totalorder %v834, %v918
        %v920 = vsel %vm919, %v904, 0.0
        %921 = vadd.xlane.f32.xlu0 %v920
        %v922 = vpop.xlane.xlu0 %921
        %v923 = vsub.f32 %v914, %v922
        %v924 = vsel %vm865, %v923, 0.0
        %925 = vadd.xlane.f32.xlu0 %v924
        %v926 = vpop.xlane.xlu0 %925
        %v927 = vrot.slane %v926, 4
        %v928 = vadd.f32 %v926, %v927
        %v929 = vrot.slane %v928, 2
        %v930 = vadd.f32 %v928, %v929
        %v931 = vrot.slane %v930, 1
        %v932 = vadd.f32 %v930, %v931
        %s933 = vtos %v932
        %s934 = smul.f32 %s933, 0.125
        %v935 = vld [vmem:[%s2] sm:$0xff]
        %v936 = vld [vmem:[%s2 + $0x8] sm:$0xff]
        %v937 = vld [vmem:[%s2 + $0x10] sm:$0xff]
        %v938 = vld [vmem:[%s2 + $0x18] sm:$0xff]
        %v939 = vmul.f32 %v935, %v935
        %v940 = vmul.f32 %v936, %v936
        %v941 = vmul.f32 %v937, %v937
        %v942 = vmul.f32 %v938, %v938
        %v943 = vadd.f32 %v939, %v940
        %v944 = vadd.f32 %v943, %v941
        %v945 = vadd.f32 %v944, %v942
        %946 = vadd.xlane.f32.xlu0 %v945
        %v947 = vpop.xlane.xlu0 %946
        %v948 = vrsqrt.pop %v947
        %v949 = vmul.f32 %v947, %v948
        %vm950 = vcmp.eq.f32.partialorder %v947, inf
        %v951 = vsel %vm950, %v947, %v949
        %vm952 = vcmp.eq.f32.partialorder %v947, 0.0
        %v953 = vand.u32 %v947, 2147483648
        %v954 = vsel %vm952, %v953, %v951
        %v955 = vmax.f32 %v954, 1e-12
        %v956 = vrcp.pop %v955
        %v957 = vmul.f32 1.0, %v956
        %v958 = vmul.f32 %v957, 10.0
        %v959 = vmul.f32 %v935, %v958
        %v960 = vmul.f32 %v936, %v958
        %v961 = vmul.f32 %v937, %v958
        %v962 = vmul.f32 %v938, %v958
        %v963 = vpack.c.bf16 %v959, %v959
        %v964 = vpack.c.bf16 %v960, %v960
        %v965 = vpack.c.bf16 %v961, %v961
        %v966 = vpack.c.bf16 %v962, %v962
        %v967 = vld [vmem:[%s3] sm:$0xff]
        %v968 = vld [vmem:[%s3 + $0x8] sm:$0xff]
        %v969 = vld [vmem:[%s3 + $0x10] sm:$0xff]
        %v970 = vld [vmem:[%s3 + $0x18] sm:$0xff]
        %v971 = vmul.f32 %v967, %v967
        %v972 = vmul.f32 %v968, %v968
        %v973 = vmul.f32 %v969, %v969
        %v974 = vmul.f32 %v970, %v970
        %v975 = vadd.f32 %v971, %v972
        %v976 = vadd.f32 %v975, %v973
        %v977 = vadd.f32 %v976, %v974
        %978 = vadd.xlane.f32.xlu0 %v977
        %v979 = vpop.xlane.xlu0 %978
        %v980 = vrsqrt.pop %v979
        %v981 = vmul.f32 %v979, %v980
        %vm982 = vcmp.eq.f32.partialorder %v979, inf
        %v983 = vsel %vm982, %v979, %v981
        %vm984 = vcmp.eq.f32.partialorder %v979, 0.0
        %v985 = vand.u32 %v979, 2147483648
        %v986 = vsel %vm984, %v985, %v983
        %v987 = vmax.f32 %v986, 1e-12
        %v988 = vrcp.pop %v987
        %v989 = vmul.f32 1.0, %v988
        %v990 = vmul.f32 %v967, %v989
        %v991 = vmul.f32 %v968, %v989
        %v992 = vmul.f32 %v969, %v989
        %v993 = vmul.f32 %v970, %v989
        %v994 = vpack.c.bf16 %v990, %v990
        %v995 = vpack.c.bf16 %v991, %v991
        %v996 = vpack.c.bf16 %v992, %v992
        %v997 = vpack.c.bf16 %v993, %v993
        %998 = vmatprep.subr.bf16.mxu0 0
        %999 = vmatpush1.bf16.xpose.msra.mxu0 0
        %1000 = vmatprep.subr.bf16.mxu0 0
        %1001 = vmatpush1.bf16.xpose.msra.mxu0 0
        %1002 = vmatprep.subr.bf16.mxu0 0
        %1003 = vmatpush1.bf16.xpose.msra.mxu0 0
        %1004 = vmatprep.subr.bf16.mxu0 0
        %1005 = vmatpush1.bf16.xpose.msra.mxu0 0
        %1006 = vmatprep.subr.bf16.mxu0 0
        %1007 = vmatpush1.bf16.xpose.msra.mxu0 0
        %1008 = vmatprep.subr.bf16.mxu0 0
        %1009 = vmatpush1.bf16.xpose.msra.mxu0 0
        %1010 = vmatprep.subr.bf16.mxu0 0
        %1011 = vmatpush1.bf16.xpose.msra.mxu0 0
        %1012 = vmatprep.subr.bf16.mxu0 %v995
        %1013 = vmatpush1.bf16.xpose.msra.mxu0 %v994
        %1014 = vmatprep.subr.bf16.mxu0 0
        %1015 = vmatpush2.bf16.xpose.msra.mxu0 0
        %1016 = vmatprep.subr.bf16.mxu0 0
        %1017 = vmatpush2.bf16.xpose.msra.mxu0 0
        %1018 = vmatprep.subr.bf16.mxu0 0
        %1019 = vmatpush2.bf16.xpose.msra.mxu0 0
        %1020 = vmatprep.subr.bf16.mxu0 0
        %1021 = vmatpush2.bf16.xpose.msra.mxu0 0
        %1022 = vmatprep.subr.bf16.mxu0 0
        %1023 = vmatpush2.bf16.xpose.msra.mxu0 0
        %1024 = vmatprep.subr.bf16.mxu0 0
        %1025 = vmatpush2.bf16.xpose.msra.mxu0 0
        %1026 = vmatprep.subr.bf16.mxu0 0
        %1027 = vmatpush2.bf16.xpose.msra.mxu0 0
        %1028 = vmatprep.subr.bf16.mxu0 0
        %1029 = vmatpush2.bf16.xpose.msra.mxu0 0
        %1030 = vmatprep.mubr.bf16.mxu0 %v964
        %1031 = vmatmul.mubr.bf16.gmra.mxu0 %v963
        %v1032 = vpop.f32.mrf.mxu0
        %v1033 = vadd.f32 0.0, %v1032
        %v1034 = vpop.f32.mrf.mxu0
        %v1035 = vpop.f32.mrf.mxu0
        %v1036 = vpop.f32.mrf.mxu0
        %1037 = vdwg.mxu0
        %1038 = vmatprep.subr.bf16.mxu0 0
        %1039 = vmatpush1.bf16.xpose.msra.mxu0 0
        %1040 = vmatprep.subr.bf16.mxu0 0
        %1041 = vmatpush1.bf16.xpose.msra.mxu0 0
        %1042 = vmatprep.subr.bf16.mxu0 0
        %1043 = vmatpush1.bf16.xpose.msra.mxu0 0
        %1044 = vmatprep.subr.bf16.mxu0 0
        %1045 = vmatpush1.bf16.xpose.msra.mxu0 0
        %1046 = vmatprep.subr.bf16.mxu0 0
        %1047 = vmatpush1.bf16.xpose.msra.mxu0 0
        %1048 = vmatprep.subr.bf16.mxu0 0
        %1049 = vmatpush1.bf16.xpose.msra.mxu0 0
        %1050 = vmatprep.subr.bf16.mxu0 0
        %1051 = vmatpush1.bf16.xpose.msra.mxu0 0
        %1052 = vmatprep.subr.bf16.mxu0 %v997
        %1053 = vmatpush1.bf16.xpose.msra.mxu0 %v996
        %1054 = vmatprep.subr.bf16.mxu0 0
        %1055 = vmatpush2.bf16.xpose.msra.mxu0 0
        %1056 = vmatprep.subr.bf16.mxu0 0
        %1057 = vmatpush2.bf16.xpose.msra.mxu0 0
        %1058 = vmatprep.subr.bf16.mxu0 0
        %1059 = vmatpush2.bf16.xpose.msra.mxu0 0
        %1060 = vmatprep.subr.bf16.mxu0 0
        %1061 = vmatpush2.bf16.xpose.msra.mxu0 0
        %1062 = vmatprep.subr.bf16.mxu0 0
        %1063 = vmatpush2.bf16.xpose.msra.mxu0 0
        %1064 = vmatprep.subr.bf16.mxu0 0
        %1065 = vmatpush2.bf16.xpose.msra.mxu0 0
        %1066 = vmatprep.subr.bf16.mxu0 0
        %1067 = vmatpush2.bf16.xpose.msra.mxu0 0
        %1068 = vmatprep.subr.bf16.mxu0 0
        %1069 = vmatpush2.bf16.xpose.msra.mxu0 0
        %1070 = vmatprep.mubr.bf16.mxu0 %v966
        %1071 = vmatmul.mubr.bf16.gmra.mxu0 %v965
        %v1072 = vpop.f32.mrf.mxu0
        %v1073 = vadd.f32 %v1033, %v1072
        %v1074 = vpop.f32.mrf.mxu0
        %v1075 = vpop.f32.mrf.mxu0
        %v1076 = vpop.f32.mrf.mxu0
        %1077 = vdwg.mxu0
        %v1078 = vld [vmem:[%s4] sm:$0x1]
        %vm1079 = vcmp.gt.f32.partialorder %v1078, 0.0
        %v1080 = vsel %vm1079, 1, 0
        %v1081 = vlaneseq
        %v1082 = vshrl.u32 %v1081, 7
        %v1083 = vsub.s32 0, %v1082
        %v1084 = vrot.slane %v1080, %v1083
        %vm1085 = vcmp.eq.s32.totalorder %v1084, 1
        %v1086 = vsel %vm1085, %v1073, -1e+30
        %vm1087 = vcmask 64512
        %v1088 = vsel %vm1087, %v1086, -inf
        %1089 = vmax.xlane.f32.xlu0 %v1088
        %v1090 = vpop.xlane.xlu0 %1089
        %v1091 = vsub.f32 %v1086, %v1090
        %v1092 = vmul.f32 %v1091, 1.442695
        %v1093 = vpow.pop %v1092
        %v1094 = vsel %vm1087, %v1093, 0.0
        %1095 = vadd.xlane.f32.xlu0 %v1094
        %v1096 = vpop.xlane.xlu0 %1095
        %v1097 = vlog2.pop %v1096
        %v1098 = vmul.f32 %v1097, 0.6931472
        %v1099 = vadd.f32 %v1090, %v1098
        %v1100 = vld [vmem:[%s5] sm:$0xff]
        %1101 = vset.pattern.permute.xlu0 0
        %1102 = vperm.xlu0 %1101, %v1100
        %v1103 = vpop.permute.xlu0 %1102
        %vm1104 = vcmp.eq.s32.totalorder %v834, %v1103
        %v1105 = vsel %vm1104, %v1086, 0.0
        %v1106 = vsel %vm1087, %v1105, 0.0
        %1107 = vadd.xlane.f32.xlu0 %v1106
        %v1108 = vpop.xlane.xlu0 %1107
        %v1109 = vsub.f32 %v1099, %v1108
        %v1110 = vsel %vm865, %v1109, 0.0
        %1111 = vadd.xlane.f32.xlu0 %v1110
        %v1112 = vpop.xlane.xlu0 %1111
        %v1113 = vrot.slane %v1112, 4
        %v1114 = vadd.f32 %v1112, %v1113
        %v1115 = vrot.slane %v1114, 2
        %v1116 = vadd.f32 %v1114, %v1115
        %v1117 = vrot.slane %v1116, 1
        %v1118 = vadd.f32 %v1116, %v1117
        %s1119 = vtos %v1118
        %s1120 = smul.f32 %s1119, 0.125
        %vm1121 = vcmp.eq.s32.totalorder %v834, 0
        %v1122 = vstv %s934
        %v1123 = vsel %vm1121, %v1122, 0.0
        %vm1124 = vcmp.eq.s32.totalorder %v834, 1
        %v1125 = vstv %s1120
        %v1126 = vsel %vm1124, %v1125, %v1123
        %vm1127 = vcmp.eq.s32.totalorder %v834, 2
        %v1128 = vstv %s903
        %v1129 = vsel %vm1127, %v1128, %v1126
        %1130 = vst [vmem:[%s8] sm:$0x1] %v1129
      $region60: #{losses_forward.1} parent=51 // pred_fallthru
        _
      // Predicated region
      $region61: #{losses_forward.1} parent=51 // pred_check
        %p1131 = pneg %p205
      $region62: #{losses_forward.1} parent=51 // pred_check_branch
        %1133 = sbr.rel (%p1131) target = $region64
      $region63: #{losses_forward.1} parent=51 // pred_region
        _
      $region64: #{losses_forward.1} parent=51 // pred_fallthru
        _
      // Predicated region
      $region65: #{losses_forward.1} parent=51 // pred_check
        %p1134 = pneg %p205
      $region66: #{losses_forward.1} parent=51 // pred_check_branch
        %1136 = sbr.rel (%p1134) target = $region68
      $region67: #{losses_forward.1} parent=51 // pred_region
        _
      $region68: #{losses_forward.1} parent=51 // pred_fallthru
        _
    $region52: #{losses_forward.1} parent=5 // pred_fallthru
      _
    %p1137 = scmp.le.s32.totalorder 2, %s14
    // Predicated region
    $region69: #{losses_forward.1} parent=5 // pred_check
      %p1138 = pneg %p1137
    $region70: #{losses_forward.1} parent=5 // pred_check_branch
      %1140 = sbr.rel (%p1138) target = $region72
    $region71: #{losses_forward.1} parent=5 // pred_region
      %s1141 = ssub.s32 %s14, 2
    $region72: #{losses_forward.1} parent=5 // pred_fallthru
      _
  $region6: #{losses_forward.1} parent=0 // loop_footer
    %s18 = sadd.s32 1, %s14
  $region7: #{losses_forward.1} parent=0 // loop_footer_branch
    %13 = sbr.rel target = $region3
  $region8: #{losses_forward.1} parent=0 // loop_exit
    _

</llo_original>
